<compile_context>
chip_gen: v5e
topology: v5e:2x2
jax: 0.10.0
libtpu: 0.0.40
codegen_flags: <defaults>
</compile_context>

<pallas_src>
import functools

import jax
import jax.numpy as jnp
from jax import lax
from jax.experimental import pallas as pl
from jax.experimental.pallas import tpu as pltpu

_EPS = 1e-5  # torch.nn.InstanceNorm2d default


def _conv_block_kernel(x_id_ref, x_hw_ref, w_ref, b_ref, o_ref, *, H, W, gc):
    """One batch element per grid step.

    x_id_ref: (1, H*W, gc)       identity branch, channels-last, flattened spatial
    x_hw_ref: (1, H+2, W+2, gc)  conv branch, zero-padded, channels-last
    w_ref:    (9, gc, gc)        3x3 conv weights, tap-major, (ci, co) per tap
    b_ref:    (1, gc)            conv bias
    o_ref:    (1, 2*gc, H*W)     output, NCHW-flat (spatial on the 128-lane axis)
    """
    HW = H * W
    xp = x_hw_ref[0].astype(jnp.float32)                      # (H+2, W+2, gc)

    # 3x3 conv == 9 shifted channel-mixing matmuls, f32 accumulation on the MXU.
    # Accumulator starts as the broadcast bias (hoisted once, outside the tap loop).
    acc = jnp.broadcast_to(b_ref[...], (HW, gc)).astype(jnp.float32)
    for t in range(9):                                        # static unroll: 9 taps
        dy, dx = divmod(t, 3)
        xs = xp[dy:dy + H, dx:dx + W, :].reshape(HW, gc)
        acc = acc + jnp.dot(xs, w_ref[t], preferred_element_type=jnp.float32)
    conv = acc                                                # (HW, gc)

    # TODO(synk): PatchExpand -> Linear(128,64) -> STMBlock on the x_id branch have no
    # definitions in the spec (and their dims are inconsistent with the gc=32 split),
    # so the x_id branch is passed through unchanged.
    xid = x_id_ref[0].astype(jnp.float32)                     # (HW, gc)

    y = jnp.concatenate([xid, conv], axis=-1)                 # (HW, 2*gc) concat on dim=1
    y = jnp.maximum(y, 0.0)                                   # ReLU (InceptionDWConv2d tail)

    # Transpose to (C, HW): lane-axis stats + lane-dense, already-NCHW store.
    yt = y.T                                                  # (2*gc, HW)
    inv_n = jnp.float32(1.0 / HW)
    mean = jnp.sum(yt, axis=-1, keepdims=True) * inv_n        # (2*gc, 1)
    cen = yt - mean
    var = jnp.sum(cen * cen, axis=-1, keepdims=True) * inv_n  # biased var (PyTorch IN)
    yn = cen * lax.rsqrt(var + jnp.float32(_EPS))             # InstanceNorm2d, affine=False
    o_ref[0] = jnp.maximum(yn, 0.0).astype(o_ref.dtype)       # final ReLU


def convolution_block(x, conv_w, conv_b):
    """x: (B, C, H, W) with C == 2*gc; conv_w: (gc, gc, 3, 3) PyTorch OIHW; conv_b: (gc,).
    Returns (B, C, H, W), matching ConvolutionBlock.forward (x_id branch as identity)."""
    B, C, H, W = x.shape
    gc = conv_w.shape[0]
    assert C == 2 * gc, "InceptionDWConv2d splits channels into two equal halves"
    HW = H * W
    Hp, Wp = H + 2, W + 2

    # Layout plumbing only (no compute, no dtype cast of x): channels-last view for the
    # conv-branch matmuls; flattened-spatial view for the identity branch.
    x_nhwc = jnp.transpose(x, (0, 2, 3, 1))                   # (B, H, W, C)
    x_id = x_nhwc[..., :gc].reshape(B, HW, gc)
    x_hw = jnp.pad(x_nhwc[..., gc:], ((0, 0), (1, 1), (1, 1), (0, 0)))

    # (kh, kw, ci, co) tap-major weights -> kernel does plain row-major matmuls.
    w9 = jnp.transpose(conv_w, (2, 3, 1, 0)).reshape(9, gc, gc).astype(jnp.float32)
    b2 = conv_b.reshape(1, gc).astype(jnp.float32)

    kernel = functools.partial(_conv_block_kernel, H=H, W=W, gc=gc)
    out = pl.pallas_call(
        kernel,
        out_shape=jax.ShapeDtypeStruct((B, 2 * gc, HW), jnp.float32),
        grid=(B,),
        in_specs=[
            pl.BlockSpec((1, HW, gc), lambda b: (b, 0, 0)),
            pl.BlockSpec((1, Hp, Wp, gc), lambda b: (b, 0, 0, 0)),
            pl.BlockSpec((9, gc, gc), lambda b: (0, 0, 0)),   # weights resident across grid
            pl.BlockSpec((1, gc), lambda b: (0, 0)),          # bias resident across grid
        ],
        out_specs=pl.BlockSpec((1, 2 * gc, HW), lambda b: (b, 0, 0)),
        compiler_params=pltpu.CompilerParams(
            dimension_semantics=("parallel",),                # megacore sharding on v7x
            vmem_limit_bytes=32 * 1024 * 1024,
        ),
    )(x_id, x_hw, w9, b2)

    return out.reshape(B, C, H, W)


def _reference(x, w, b):
    """Pure-JAX mirror of ConvolutionBlock.forward with the x_id branch as identity."""
    gc = w.shape[0]
    x_id, x_hw = x[:, :gc], x[:, gc:]
    conv = lax.conv_general_dilated(
        x_hw, w, window_strides=(1, 1), padding=((1, 1), (1, 1)),
        dimension_numbers=("NCHW", "OIHW", "NCHW"),
        precision=lax.Precision.HIGHEST,
    ) + b[None, :, None, None]
    y = jnp.maximum(jnp.concatenate([x_id, conv], axis=1), 0.0)   # concat + ReLU
    mean = jnp.mean(y, axis=(2, 3), keepdims=True)                # InstanceNorm2d
    var = jnp.mean((y - mean) ** 2, axis=(2, 3), keepdims=True)
    yn = (y - mean) / jnp.sqrt(var + _EPS)
    return jnp.maximum(yn, 0.0)                                   # final ReLU


if __name__ == "__main__":
    # The module hard-codes InceptionDWConv2d(64) -> gc = 32, so the input needs 64 channels.
    B, C, H, W = 2, 64, 16, 16
    gc = C // 2

    key = jax.random.PRNGKey(0)
    kx, kw, kb = jax.random.split(key, 3)

    x = jax.random.normal(kx, (B, C, H, W), dtype=jnp.float32)

    # PyTorch-style Conv2d init: U(-1/sqrt(fan_in), 1/sqrt(fan_in)), fan_in = gc * 3 * 3.
    bound = 1.0 / jnp.sqrt(jnp.float32(gc * 9))
    w = jax.random.uniform(kw, (gc, gc, 3, 3), jnp.float32, -bound, bound)
    b = jax.random.uniform(kb, (gc,), jnp.float32, -bound, bound)

    out = convolution_block(x, w, b)
    out = jax.block_until_ready(out)

    ref = _reference(x, w, b)
    assert out.shape == (B, C, H, W)
    assert jnp.allclose(out, ref, atol=1e-4, rtol=1e-4), float(jnp.max(jnp.abs(out - ref)))

    print("KERNEL_OK")
</pallas_src>

<mosaic_0001>
module attributes {stable_mosaic.version = 11 : i64} {
  func.func @_conv_block_kernel(%arg0: i32, %arg1: memref<1x256x32xf32, #tpu.memory_space<vmem>>, %arg2: memref<1x18x18x32xf32, #tpu.memory_space<vmem>>, %arg3: memref<9x32x32xf32, #tpu.memory_space<vmem>>, %arg4: memref<1x32xf32, #tpu.memory_space<vmem>>, %arg5: memref<1x64x256xf32, #tpu.memory_space<vmem>>) attributes {dimension_semantics = [#tpu.dimension_semantics<parallel>], iteration_bounds = array<i64: 2>, scalar_prefetch = 0 : i64, scratch_operands = 0 : i64, tpu.core_type = #tpu.core_type<tc>, window_params = [{transform_indices = @transform_0, window_bounds = array<i64: 1, 256, 32>}, {transform_indices = @transform_1, window_bounds = array<i64: 1, 18, 18, 32>}, {pipeline_mode = #tpu.pipeline_mode<synchronous>, transform_indices = @transform_2, window_bounds = array<i64: 9, 32, 32>}, {pipeline_mode = #tpu.pipeline_mode<synchronous>, transform_indices = @transform_3, window_bounds = array<i64: 1, 32>}, {transform_indices = @transform_4, window_bounds = array<i64: 1, 64, 256>}]} {
    %c0 = arith.constant 0 : index
    %c0_0 = arith.constant 0 : index
    %c0_1 = arith.constant 0 : index
    %c0_2 = arith.constant 0 : index
    %0 = vector.load %arg2[%c0, %c0_0, %c0_1, %c0_2] : memref<1x18x18x32xf32, #tpu.memory_space<vmem>>, vector<1x18x18x32xf32>
    %1 = vector.shape_cast %0 : vector<1x18x18x32xf32> to vector<18x18x32xf32>
    %c0_3 = arith.constant 0 : index
    %c0_4 = arith.constant 0 : index
    %2 = vector.load %arg4[%c0_3, %c0_4] : memref<1x32xf32, #tpu.memory_space<vmem>>, vector<1x32xf32>
    %3 = vector.shape_cast %2 : vector<1x32xf32> to vector<1x32xf32>
    %4 = vector.broadcast %3 : vector<1x32xf32> to vector<256x32xf32>
    %5 = vector.extract_strided_slice %1 {offsets = [0, 0, 0], sizes = [16, 16, 32], strides = [1, 1, 1]} : vector<18x18x32xf32> to vector<16x16x32xf32>
    %6 = vector.shape_cast %5 : vector<16x16x32xf32> to vector<256x32xf32>
    %c0_5 = arith.constant 0 : index
    %c0_6 = arith.constant 0 : index
    %c0_7 = arith.constant 0 : index
    %7 = vector.load %arg3[%c0_5, %c0_6, %c0_7] : memref<9x32x32xf32, #tpu.memory_space<vmem>>, vector<1x32x32xf32>
    %8 = vector.shape_cast %7 : vector<1x32x32xf32> to vector<32x32xf32>
    %cst = arith.constant dense<0.000000e+00> : vector<256x32xf32>
    %9 = tpu.matmul %6, %8, %cst {dimension_numbers = #tpu.dot_dimension_numbers<[1], [0], [0], [1], [0, 0, 1, 1], [], []>} : vector<256x32xf32>, vector<32x32xf32>, vector<256x32xf32> -> vector<256x32xf32>
    %10 = arith.addf %4, %9 : vector<256x32xf32>
    %11 = vector.extract_strided_slice %1 {offsets = [0, 1, 0], sizes = [16, 16, 32], strides = [1, 1, 1]} : vector<18x18x32xf32> to vector<16x16x32xf32>
    %12 = vector.shape_cast %11 : vector<16x16x32xf32> to vector<256x32xf32>
    %c1 = arith.constant 1 : index
    %c0_8 = arith.constant 0 : index
    %c0_9 = arith.constant 0 : index
    %13 = vector.load %arg3[%c1, %c0_8, %c0_9] : memref<9x32x32xf32, #tpu.memory_space<vmem>>, vector<1x32x32xf32>
    %14 = vector.shape_cast %13 : vector<1x32x32xf32> to vector<32x32xf32>
    %cst_10 = arith.constant dense<0.000000e+00> : vector<256x32xf32>
    %15 = tpu.matmul %12, %14, %cst_10 {dimension_numbers = #tpu.dot_dimension_numbers<[1], [0], [0], [1], [0, 0, 1, 1], [], []>} : vector<256x32xf32>, vector<32x32xf32>, vector<256x32xf32> -> vector<256x32xf32>
    %16 = arith.addf %10, %15 : vector<256x32xf32>
    %17 = vector.extract_strided_slice %1 {offsets = [0, 2, 0], sizes = [16, 16, 32], strides = [1, 1, 1]} : vector<18x18x32xf32> to vector<16x16x32xf32>
    %18 = vector.shape_cast %17 : vector<16x16x32xf32> to vector<256x32xf32>
    %c2 = arith.constant 2 : index
    %c0_11 = arith.constant 0 : index
    %c0_12 = arith.constant 0 : index
    %19 = vector.load %arg3[%c2, %c0_11, %c0_12] : memref<9x32x32xf32, #tpu.memory_space<vmem>>, vector<1x32x32xf32>
    %20 = vector.shape_cast %19 : vector<1x32x32xf32> to vector<32x32xf32>
    %cst_13 = arith.constant dense<0.000000e+00> : vector<256x32xf32>
    %21 = tpu.matmul %18, %20, %cst_13 {dimension_numbers = #tpu.dot_dimension_numbers<[1], [0], [0], [1], [0, 0, 1, 1], [], []>} : vector<256x32xf32>, vector<32x32xf32>, vector<256x32xf32> -> vector<256x32xf32>
    %22 = arith.addf %16, %21 : vector<256x32xf32>
    %23 = vector.extract_strided_slice %1 {offsets = [1, 0, 0], sizes = [16, 16, 32], strides = [1, 1, 1]} : vector<18x18x32xf32> to vector<16x16x32xf32>
    %24 = vector.shape_cast %23 : vector<16x16x32xf32> to vector<256x32xf32>
    %c3 = arith.constant 3 : index
    %c0_14 = arith.constant 0 : index
    %c0_15 = arith.constant 0 : index
    %25 = vector.load %arg3[%c3, %c0_14, %c0_15] : memref<9x32x32xf32, #tpu.memory_space<vmem>>, vector<1x32x32xf32>
    %26 = vector.shape_cast %25 : vector<1x32x32xf32> to vector<32x32xf32>
    %cst_16 = arith.constant dense<0.000000e+00> : vector<256x32xf32>
    %27 = tpu.matmul %24, %26, %cst_16 {dimension_numbers = #tpu.dot_dimension_numbers<[1], [0], [0], [1], [0, 0, 1, 1], [], []>} : vector<256x32xf32>, vector<32x32xf32>, vector<256x32xf32> -> vector<256x32xf32>
    %28 = arith.addf %22, %27 : vector<256x32xf32>
    %29 = vector.extract_strided_slice %1 {offsets = [1, 1, 0], sizes = [16, 16, 32], strides = [1, 1, 1]} : vector<18x18x32xf32> to vector<16x16x32xf32>
    %30 = vector.shape_cast %29 : vector<16x16x32xf32> to vector<256x32xf32>
    %c4 = arith.constant 4 : index
    %c0_17 = arith.constant 0 : index
    %c0_18 = arith.constant 0 : index
    %31 = vector.load %arg3[%c4, %c0_17, %c0_18] : memref<9x32x32xf32, #tpu.memory_space<vmem>>, vector<1x32x32xf32>
    %32 = vector.shape_cast %31 : vector<1x32x32xf32> to vector<32x32xf32>
    %cst_19 = arith.constant dense<0.000000e+00> : vector<256x32xf32>
    %33 = tpu.matmul %30, %32, %cst_19 {dimension_numbers = #tpu.dot_dimension_numbers<[1], [0], [0], [1], [0, 0, 1, 1], [], []>} : vector<256x32xf32>, vector<32x32xf32>, vector<256x32xf32> -> vector<256x32xf32>
    %34 = arith.addf %28, %33 : vector<256x32xf32>
    %35 = vector.extract_strided_slice %1 {offsets = [1, 2, 0], sizes = [16, 16, 32], strides = [1, 1, 1]} : vector<18x18x32xf32> to vector<16x16x32xf32>
    %36 = vector.shape_cast %35 : vector<16x16x32xf32> to vector<256x32xf32>
    %c5 = arith.constant 5 : index
    %c0_20 = arith.constant 0 : index
    %c0_21 = arith.constant 0 : index
    %37 = vector.load %arg3[%c5, %c0_20, %c0_21] : memref<9x32x32xf32, #tpu.memory_space<vmem>>, vector<1x32x32xf32>
    %38 = vector.shape_cast %37 : vector<1x32x32xf32> to vector<32x32xf32>
    %cst_22 = arith.constant dense<0.000000e+00> : vector<256x32xf32>
    %39 = tpu.matmul %36, %38, %cst_22 {dimension_numbers = #tpu.dot_dimension_numbers<[1], [0], [0], [1], [0, 0, 1, 1], [], []>} : vector<256x32xf32>, vector<32x32xf32>, vector<256x32xf32> -> vector<256x32xf32>
    %40 = arith.addf %34, %39 : vector<256x32xf32>
    %41 = vector.extract_strided_slice %1 {offsets = [2, 0, 0], sizes = [16, 16, 32], strides = [1, 1, 1]} : vector<18x18x32xf32> to vector<16x16x32xf32>
    %42 = vector.shape_cast %41 : vector<16x16x32xf32> to vector<256x32xf32>
    %c6 = arith.constant 6 : index
    %c0_23 = arith.constant 0 : index
    %c0_24 = arith.constant 0 : index
    %43 = vector.load %arg3[%c6, %c0_23, %c0_24] : memref<9x32x32xf32, #tpu.memory_space<vmem>>, vector<1x32x32xf32>
    %44 = vector.shape_cast %43 : vector<1x32x32xf32> to vector<32x32xf32>
    %cst_25 = arith.constant dense<0.000000e+00> : vector<256x32xf32>
    %45 = tpu.matmul %42, %44, %cst_25 {dimension_numbers = #tpu.dot_dimension_numbers<[1], [0], [0], [1], [0, 0, 1, 1], [], []>} : vector<256x32xf32>, vector<32x32xf32>, vector<256x32xf32> -> vector<256x32xf32>
    %46 = arith.addf %40, %45 : vector<256x32xf32>
    %47 = vector.extract_strided_slice %1 {offsets = [2, 1, 0], sizes = [16, 16, 32], strides = [1, 1, 1]} : vector<18x18x32xf32> to vector<16x16x32xf32>
    %48 = vector.shape_cast %47 : vector<16x16x32xf32> to vector<256x32xf32>
    %c7 = arith.constant 7 : index
    %c0_26 = arith.constant 0 : index
    %c0_27 = arith.constant 0 : index
    %49 = vector.load %arg3[%c7, %c0_26, %c0_27] : memref<9x32x32xf32, #tpu.memory_space<vmem>>, vector<1x32x32xf32>
    %50 = vector.shape_cast %49 : vector<1x32x32xf32> to vector<32x32xf32>
    %cst_28 = arith.constant dense<0.000000e+00> : vector<256x32xf32>
    %51 = tpu.matmul %48, %50, %cst_28 {dimension_numbers = #tpu.dot_dimension_numbers<[1], [0], [0], [1], [0, 0, 1, 1], [], []>} : vector<256x32xf32>, vector<32x32xf32>, vector<256x32xf32> -> vector<256x32xf32>
    %52 = arith.addf %46, %51 : vector<256x32xf32>
    %53 = vector.extract_strided_slice %1 {offsets = [2, 2, 0], sizes = [16, 16, 32], strides = [1, 1, 1]} : vector<18x18x32xf32> to vector<16x16x32xf32>
    %54 = vector.shape_cast %53 : vector<16x16x32xf32> to vector<256x32xf32>
    %c8 = arith.constant 8 : index
    %c0_29 = arith.constant 0 : index
    %c0_30 = arith.constant 0 : index
    %55 = vector.load %arg3[%c8, %c0_29, %c0_30] : memref<9x32x32xf32, #tpu.memory_space<vmem>>, vector<1x32x32xf32>
    %56 = vector.shape_cast %55 : vector<1x32x32xf32> to vector<32x32xf32>
    %cst_31 = arith.constant dense<0.000000e+00> : vector<256x32xf32>
    %57 = tpu.matmul %54, %56, %cst_31 {dimension_numbers = #tpu.dot_dimension_numbers<[1], [0], [0], [1], [0, 0, 1, 1], [], []>} : vector<256x32xf32>, vector<32x32xf32>, vector<256x32xf32> -> vector<256x32xf32>
    %58 = arith.addf %52, %57 : vector<256x32xf32>
    %c0_32 = arith.constant 0 : index
    %c0_33 = arith.constant 0 : index
    %c0_34 = arith.constant 0 : index
    %59 = vector.load %arg1[%c0_32, %c0_33, %c0_34] : memref<1x256x32xf32, #tpu.memory_space<vmem>>, vector<1x256x32xf32>
    %60 = vector.shape_cast %59 : vector<1x256x32xf32> to vector<256x32xf32>
    %61 = tpu.concatenate %60, %58 in 1 : vector<256x32xf32>, vector<256x32xf32> -> vector<256x64xf32>
    %cst_35 = arith.constant 0.000000e+00 : f32
    %62 = vector.broadcast %cst_35 : f32 to vector<256x64xf32>
    %63 = arith.maximumf %61, %62 : vector<256x64xf32>
    %64 = tpu.transpose %63, [1, 0] : vector<256x64xf32> -> vector<64x256xf32>
    %cst_36 = arith.constant dense<0.000000e+00> : vector<64xf32>
    %65 = vector.multi_reduction <add>, %64, %cst_36 [1] : vector<64x256xf32> to vector<64xf32>
    %66 = vector.shape_cast %65 : vector<64xf32> to vector<64x1xf32>
    %cst_37 = arith.constant 3.906250e-03 : f32
    %67 = vector.broadcast %cst_37 : f32 to vector<64x1xf32>
    %68 = arith.mulf %66, %67 : vector<64x1xf32>
    %69 = vector.broadcast %68 : vector<64x1xf32> to vector<64x256xf32>
    %70 = arith.subf %64, %69 : vector<64x256xf32>
    %71 = arith.mulf %70, %70 : vector<64x256xf32>
    %cst_38 = arith.constant dense<0.000000e+00> : vector<64xf32>
    %72 = vector.multi_reduction <add>, %71, %cst_38 [1] : vector<64x256xf32> to vector<64xf32>
    %73 = vector.shape_cast %72 : vector<64xf32> to vector<64x1xf32>
    %cst_39 = arith.constant 3.906250e-03 : f32
    %74 = vector.broadcast %cst_39 : f32 to vector<64x1xf32>
    %75 = arith.mulf %73, %74 : vector<64x1xf32>
    %cst_40 = arith.constant 9.99999974E-6 : f32
    %76 = vector.broadcast %cst_40 : f32 to vector<64x1xf32>
    %77 = arith.addf %75, %76 : vector<64x1xf32>
    %78 = math.rsqrt %77 : vector<64x1xf32>
    %79 = vector.broadcast %78 : vector<64x1xf32> to vector<64x256xf32>
    %80 = arith.mulf %70, %79 : vector<64x256xf32>
    %cst_41 = arith.constant 0.000000e+00 : f32
    %81 = vector.broadcast %cst_41 : f32 to vector<64x256xf32>
    %82 = arith.maximumf %80, %81 : vector<64x256xf32>
    %c0_42 = arith.constant 0 : index
    %c0_43 = arith.constant 0 : index
    %c0_44 = arith.constant 0 : index
    %83 = vector.load %arg5[%c0_42, %c0_43, %c0_44] : memref<1x64x256xf32, #tpu.memory_space<vmem>>, vector<1x64x256xf32>
    %84 = vector.shape_cast %83 : vector<1x64x256xf32> to vector<64x256xf32>
    %85 = vector.shape_cast %82 : vector<64x256xf32> to vector<1x64x256xf32>
    tpu.vector_store %arg5[%c0_42, %c0_43, %c0_44], %85 {strides = array<i32>} : memref<1x64x256xf32, #tpu.memory_space<vmem>>, vector<1x64x256xf32>,
    return
  }
  func.func @transform_0(%arg0: i32) -> (i32, i32, i32) {
    %c0_i32 = arith.constant 0 : i32
    %c0_i32_0 = arith.constant 0 : i32
    %c0_i32_1 = arith.constant 0 : i32
    return %arg0, %c0_i32, %c0_i32_0 : i32, i32, i32
  }
  func.func @transform_1(%arg0: i32) -> (i32, i32, i32, i32) {
    %c0_i32 = arith.constant 0 : i32
    %c0_i32_0 = arith.constant 0 : i32
    %c0_i32_1 = arith.constant 0 : i32
    %c0_i32_2 = arith.constant 0 : i32
    return %arg0, %c0_i32, %c0_i32_0, %c0_i32_1 : i32, i32, i32, i32
  }
  func.func @transform_2(%arg0: i32) -> (i32, i32, i32) {
    %c0_i32 = arith.constant 0 : i32
    %c0_i32_0 = arith.constant 0 : i32
    %c0_i32_1 = arith.constant 0 : i32
    %c0_i32_2 = arith.constant 0 : i32
    return %c0_i32, %c0_i32_0, %c0_i32_1 : i32, i32, i32
  }
  func.func @transform_3(%arg0: i32) -> (i32, i32) {
    %c0_i32 = arith.constant 0 : i32
    %c0_i32_0 = arith.constant 0 : i32
    %c0_i32_1 = arith.constant 0 : i32
    return %c0_i32, %c0_i32_0 : i32, i32
  }
  func.func @transform_4(%arg0: i32) -> (i32, i32, i32) {
    %c0_i32 = arith.constant 0 : i32
    %c0_i32_0 = arith.constant 0 : i32
    %c0_i32_1 = arith.constant 0 : i32
    return %arg0, %c0_i32, %c0_i32_0 : i32, i32, i32
  }
}

</mosaic_0001>

<llo_original>
// kernel: tpu_custom_call.1
$region0: #{tpu_custom_call.1}
  #allocation0 [shape = 'u32[]', space=smem, size = 0x4, offset = 0x4, fixed_abs, tag = 'smem constant byte address 0x4 - core index']
  #allocation1 [shape = 'u32[72,128]{1,0:T(1,128)}', space=vmem, size = 0x9000, scoped, tag = 'internal scratch']
  %s0 = inlined_call_operand.vmem [shape: f32[2,256,32], index: 0, kind: input, shape index: {}]
  %s1 = inlined_call_operand.vmem [shape: f32[2,18,18,32], index: 1, kind: input, shape index: {}]
  %s2 = inlined_call_operand.vmem [shape: f32[9,32,32], index: 2, kind: input, shape index: {}]
  %s3 = inlined_call_operand.vmem [shape: f32[1,32], index: 3, kind: input, shape index: {}]
  %s4 = inlined_call_operand.hbm [shape: f32[2,64,256], index: 4, kind: output, shape index: {}]
  %s5 = sld [smem:[#allocation0]]
  $region49: #{tpu_custom_call.1} parent=0
    _
  %s7 = ssub.s32 1, %s5
  %s8 = scalar_select 0, %s7, %s5
  $region1: #{tpu_custom_call.1} parent=0
    #allocation2 [shape = 'u8[131072]{0}', space=vmem, size = 0x20000, scoped, tag = 'output window, operand 0']
    #allocation3 [shape = 's32[2]{0}', space=sflag, size = 0x8, scoped, tag = 'scoped memory for tpu_custom_call.1']
    %9 = vsyncpa [#allocation3], 0
    %s10 = scalar_lea.sflag [#allocation3], 1
    %11 = vsyncpa %s10, 0
    loop: start=0, step=1, limit=4
    $region2: #{tpu_custom_call.1} parent=1 // loop_pre_header
      _
    $region3: #{tpu_custom_call.1} parent=1 // loop_header
      %s13 = sphi 0, %s17
      %p14 = scmp.ge.s32.totalorder %s13, 4
      %s23 = sphi 0, %s25
      %s26 = sphi 0, %s23
      %s27 = sphi 0, %s26
      %s43 = sphi 0, %s27
      %s49 = sphi 0, %s51
      %s52 = sphi 0, %s49
      %s53 = sphi 0, %s52
      %s69 = sphi 0, %s53
      %s73 = sphi 0, %s73
      %s75 = sphi 0, %s73
      %s76 = sphi 0, %s75
      %s90 = sphi 0, %s76
      %s94 = sphi 0, %s94
      %s96 = sphi 0, %s94
      %s97 = sphi 0, %s96
      %s111 = sphi 0, %s97
      %s117 = sphi 0, %s119
      %s120 = sphi 0, %s117
      %s121 = sphi 0, %s120
      %s137 = sphi 0, %s121
    $region4: #{tpu_custom_call.1} parent=1 // loop_header_branch
      %16 = sbr.rel (%p14) target = $region8
    $region5: #{tpu_custom_call.1} parent=1 // loop_body
      %s18 = ssub.s32 %s13, 1
      %s19 = ssub.s32 %s13, 2
      %s20 = sadd.s32 %s13, 1
      %s21 = ssub.s32 %s13, %s20
      %p22 = scmp.eq.s32.totalorder %s21, 0
      %s24 = sadd.s32 %s23, 1
      %s25 = scalar_select %p22, %s23, %s24
      %p28 = pneg %p22
      %p29 = scmp.eq.s32.totalorder %s13, 1
      %p30 = por %p28, %p29
      %p31 = scmp.ne.s32.totalorder %s23, %s26
      %p32 = scmp.eq.s32.totalorder %s13, 0
      %p33 = por %p31, %p32
      %p34 = scmp.ne.s32.totalorder %s23, %s26
      %p35 = scmp.eq.s32.totalorder %s18, 1
      %p36 = por %p34, %p35
      %p37 = scmp.ne.s32.totalorder %s26, %s27
      %p38 = scmp.eq.s32.totalorder %s18, 0
      %p39 = por %p37, %p38
      %p40 = scmp.ne.s32.totalorder %s26, %s27
      %p41 = scmp.eq.s32.totalorder %s19, 1
      %p42 = por %p40, %p41
      %p44 = scmp.ne.s32.totalorder %s27, %s43
      %p45 = scmp.eq.s32.totalorder %s19, 0
      %p46 = por %p44, %p45
      %s47 = ssub.s32 %s13, %s20
      %p48 = scmp.eq.s32.totalorder %s47, 0
      %s50 = sadd.s32 %s49, 1
      %s51 = scalar_select %p48, %s49, %s50
      %p54 = pneg %p48
      %p55 = scmp.eq.s32.totalorder %s13, 1
      %p56 = por %p54, %p55
      %p57 = scmp.ne.s32.totalorder %s49, %s52
      %p58 = scmp.eq.s32.totalorder %s13, 0
      %p59 = por %p57, %p58
      %p60 = scmp.ne.s32.totalorder %s49, %s52
      %p61 = scmp.eq.s32.totalorder %s18, 1
      %p62 = por %p60, %p61
      %p63 = scmp.ne.s32.totalorder %s52, %s53
      %p64 = scmp.eq.s32.totalorder %s18, 0
      %p65 = por %p63, %p64
      %p66 = scmp.ne.s32.totalorder %s52, %s53
      %p67 = scmp.eq.s32.totalorder %s19, 1
      %p68 = por %p66, %p67
      %p70 = scmp.ne.s32.totalorder %s53, %s69
      %p71 = scmp.eq.s32.totalorder %s19, 0
      %p72 = por %p70, %p71
      %s74 = sadd.s32 %s73, 1
      %p77 = scmp.eq.s32.totalorder %s13, 1
      %p78 = scmp.ne.s32.totalorder %s73, %s75
      %p79 = scmp.eq.s32.totalorder %s13, 0
      %p80 = por %p78, %p79
      %p81 = scmp.ne.s32.totalorder %s73, %s75
      %p82 = scmp.eq.s32.totalorder %s18, 1
      %p83 = por %p81, %p82
      %p84 = scmp.ne.s32.totalorder %s75, %s76
      %p85 = scmp.eq.s32.totalorder %s18, 0
      %p86 = por %p84, %p85
      %p87 = scmp.ne.s32.totalorder %s75, %s76
      %p88 = scmp.eq.s32.totalorder %s19, 1
      %p89 = por %p87, %p88
      %p91 = scmp.ne.s32.totalorder %s76, %s90
      %p92 = scmp.eq.s32.totalorder %s19, 0
      %p93 = por %p91, %p92
      %s95 = sadd.s32 %s94, 1
      %p98 = scmp.eq.s32.totalorder %s13, 1
      %p99 = scmp.ne.s32.totalorder %s94, %s96
      %p100 = scmp.eq.s32.totalorder %s13, 0
      %p101 = por %p99, %p100
      %p102 = scmp.ne.s32.totalorder %s94, %s96
      %p103 = scmp.eq.s32.totalorder %s18, 1
      %p104 = por %p102, %p103
      %p105 = scmp.ne.s32.totalorder %s96, %s97
      %p106 = scmp.eq.s32.totalorder %s18, 0
      %p107 = por %p105, %p106
      %p108 = scmp.ne.s32.totalorder %s96, %s97
      %p109 = scmp.eq.s32.totalorder %s19, 1
      %p110 = por %p108, %p109
      %p112 = scmp.ne.s32.totalorder %s97, %s111
      %p113 = scmp.eq.s32.totalorder %s19, 0
      %p114 = por %p112, %p113
      %s115 = ssub.s32 %s13, %s20
      %p116 = scmp.eq.s32.totalorder %s115, 0
      %s118 = sadd.s32 %s117, 1
      %s119 = scalar_select %p116, %s117, %s118
      %p122 = pneg %p116
      %p123 = scmp.eq.s32.totalorder %s13, 1
      %p124 = por %p122, %p123
      %p125 = scmp.ne.s32.totalorder %s117, %s120
      %p126 = scmp.eq.s32.totalorder %s13, 0
      %p127 = por %p125, %p126
      %p128 = scmp.ne.s32.totalorder %s117, %s120
      %p129 = scmp.eq.s32.totalorder %s18, 1
      %p130 = por %p128, %p129
      %p131 = scmp.ne.s32.totalorder %s120, %s121
      %p132 = scmp.eq.s32.totalorder %s18, 0
      %p133 = por %p131, %p132
      %p134 = scmp.ne.s32.totalorder %s120, %s121
      %p135 = scmp.eq.s32.totalorder %s19, 1
      %p136 = por %p134, %p135
      %p138 = scmp.ne.s32.totalorder %s121, %s137
      %p139 = scmp.eq.s32.totalorder %s19, 0
      %p140 = por %p138, %p139
      %p141 = scmp.le.s32.totalorder 1, %s13
      %p142 = scmp.lt.s32.totalorder %s13, 3
      %p143 = pnand %p141, %p142
      %p144 = pneg %p143
      // Predicated region
      $region9: #{tpu_custom_call.1} parent=5 // pred_check
        _
      $region10: #{tpu_custom_call.1} parent=5 // pred_check_branch
        %146 = sbr.rel (%p143) target = $region12
      $region11: #{tpu_custom_call.1} parent=5 // pred_region
        %s147 = ssub.s32 %s13, 1
        // Predicated region
        $region13: #{tpu_custom_call.1} parent=11 // pred_check
          %p148 = pneg %p86
        $region14: #{tpu_custom_call.1} parent=11 // pred_check_branch
          %150 = sbr.rel (%p148) target = $region16
        $region15: #{tpu_custom_call.1} parent=11 // pred_region
          _
        $region16: #{tpu_custom_call.1} parent=11 // pred_fallthru
          _
        // Predicated region
        $region17: #{tpu_custom_call.1} parent=11 // pred_check
          %p151 = pneg %p107
        $region18: #{tpu_custom_call.1} parent=11 // pred_check_branch
          %153 = sbr.rel (%p151) target = $region20
        $region19: #{tpu_custom_call.1} parent=11 // pred_region
          _
        $region20: #{tpu_custom_call.1} parent=11 // pred_fallthru
          _
      $region12: #{tpu_custom_call.1} parent=5 // pred_fallthru
        _
      %p154 = scmp.lt.s32.totalorder %s13, 2
      // Predicated region
      $region21: #{tpu_custom_call.1} parent=5 // pred_check
        %p155 = pneg %p154
      $region22: #{tpu_custom_call.1} parent=5 // pred_check_branch
        %157 = sbr.rel (%p155) target = $region24
      $region23: #{tpu_custom_call.1} parent=5 // pred_region
        // Predicated region
        $region25: #{tpu_custom_call.1} parent=23 // pred_check
          %p158 = pneg %p33
        $region26: #{tpu_custom_call.1} parent=23 // pred_check_branch
          %160 = sbr.rel (%p158) target = $region28
        $region27: #{tpu_custom_call.1} parent=23 // pred_region
          %p161 = scmp.lt.s32.totalorder %s13, 1
          %s162 = scalar_select %p161, %s13, 1
          %s163 = smul.addr %s162, 32
          %s164 = smul.addr %s163, 8
          %s165 = scalar_lea.vmem %s0, %s164
        $region28: #{tpu_custom_call.1} parent=23 // pred_fallthru
          _
        // Predicated region
        $region29: #{tpu_custom_call.1} parent=23 // pred_check
          %p166 = pneg %p59
        $region30: #{tpu_custom_call.1} parent=23 // pred_check_branch
          %168 = sbr.rel (%p166) target = $region32
        $region31: #{tpu_custom_call.1} parent=23 // pred_region
          %p169 = scmp.lt.s32.totalorder %s13, 1
          %s170 = scalar_select %p169, %s13, 1
          %s171 = smul.addr %s170, 54
          %s172 = smul.addr %s171, 8
          %s173 = scalar_lea.vmem %s1, %s172
        $region32: #{tpu_custom_call.1} parent=23 // pred_fallthru
          _
      $region24: #{tpu_custom_call.1} parent=5 // pred_fallthru
        _
      %p174 = scmp.le.s32.totalorder 1, %s13
      %p175 = scmp.lt.s32.totalorder %s13, 3
      %p176 = pnand %p174, %p175
      %p177 = pneg %p176
      // Predicated region
      $region33: #{tpu_custom_call.1} parent=5 // pred_check
        _
      $region34: #{tpu_custom_call.1} parent=5 // pred_check_branch
        %179 = sbr.rel (%p176) target = $region36
      $region35: #{tpu_custom_call.1} parent=5 // pred_region
        %s180 = ssub.s32 %s13, 1
        %p181 = scmp.lt.s32.totalorder %s18, 1
        %s182 = scalar_select %p181, %s18, 1
        %s183 = smul.addr %s182, 32
        %s184 = smul.addr %s183, 8
        %s185 = scalar_lea.vmem %s0, %s184
        %p186 = pneg %p39
        %p187 = pneg %p36
        %p188 = scmp.lt.s32.totalorder %s18, 1
        %s189 = scalar_select %p188, %s18, 1
        %s190 = smul.addr %s189, 54
        %s191 = smul.addr %s190, 8
        %s192 = scalar_lea.vmem %s1, %s191
        %p193 = pneg %p65
        %p194 = pneg %p62
        %p195 = pneg %p86
        %p196 = pneg %p83
        %p197 = pneg %p107
        %p198 = pneg %p104
        %p199 = pneg %p133
        %p200 = pneg %p130
        %s201 = sand.u32 %s120, 1
        %s202 = scalar_lea.sflag [#allocation3], %s201
        %s203 = sand.u32 %s120, 1
        %s204 = smul.addr %s203, 128
        %s205 = scalar_lea.vmem [#allocation2], %s204
        %p206 = scmp.lt.s32.totalorder %s18, 1
        %s207 = scalar_select %p206, %s18, 1
        %s208 = smul.addr %s207, 32
        %s209 = smul.addr %s208, 8
        %s210 = scalar_lea.vmem %s0, %s209
        %p211 = scmp.lt.s32.totalorder %s18, 1
        %s212 = scalar_select %p211, %s18, 1
        %s213 = smul.addr %s212, 54
        %s214 = smul.addr %s213, 8
        %s215 = scalar_lea.vmem %s1, %s214
        %v216 = vld [vmem:[%s215] sm:$0xff]
        %v217 = vld [vmem:[%s215 + $0x8] sm:$0xff]
        %v218 = vld [vmem:[%s215 + $0x10] sm:$0x3]
        %v219 = vld [vmem:[%s215 + $0x18] sm:$0xff]
        %v220 = vld [vmem:[%s215 + $0x20] sm:$0xff]
        %v221 = vld [vmem:[%s215 + $0x28] sm:$0x3]
        %v222 = vld [vmem:[%s215 + $0x30] sm:$0xff]
        %v223 = vld [vmem:[%s215 + $0x38] sm:$0xff]
        %v224 = vld [vmem:[%s215 + $0x40] sm:$0x3]
        %v225 = vld [vmem:[%s215 + $0x48] sm:$0xff]
        %v226 = vld [vmem:[%s215 + $0x50] sm:$0xff]
        %v227 = vld [vmem:[%s215 + $0x58] sm:$0x3]
        %v228 = vld [vmem:[%s215 + $0x60] sm:$0xff]
        %v229 = vld [vmem:[%s215 + $0x68] sm:$0xff]
        %v230 = vld [vmem:[%s215 + $0x70] sm:$0x3]
        %v231 = vld [vmem:[%s215 + $0x78] sm:$0xff]
        %v232 = vld [vmem:[%s215 + $0x80] sm:$0xff]
        %v233 = vld [vmem:[%s215 + $0x88] sm:$0x3]
        %v234 = vld [vmem:[%s215 + $0x90] sm:$0xff]
        %v235 = vld [vmem:[%s215 + $0x98] sm:$0xff]
        %v236 = vld [vmem:[%s215 + $0xa0] sm:$0x3]
        %v237 = vld [vmem:[%s215 + $0xa8] sm:$0xff]
        %v238 = vld [vmem:[%s215 + $0xb0] sm:$0xff]
        %v239 = vld [vmem:[%s215 + $0xb8] sm:$0x3]
        %v240 = vld [vmem:[%s215 + $0xc0] sm:$0xff]
        %v241 = vld [vmem:[%s215 + $0xc8] sm:$0xff]
        %v242 = vld [vmem:[%s215 + $0xd0] sm:$0x3]
        %v243 = vld [vmem:[%s215 + $0xd8] sm:$0xff]
        %v244 = vld [vmem:[%s215 + $0xe0] sm:$0xff]
        %v245 = vld [vmem:[%s215 + $0xe8] sm:$0x3]
        %v246 = vld [vmem:[%s215 + $0xf0] sm:$0xff]
        %v247 = vld [vmem:[%s215 + $0xf8] sm:$0xff]
        %v248 = vld [vmem:[%s215 + $0x100] sm:$0x3]
        %v249 = vld [vmem:[%s215 + $0x108] sm:$0xff]
        %v250 = vld [vmem:[%s215 + $0x110] sm:$0xff]
        %v251 = vld [vmem:[%s215 + $0x118] sm:$0x3]
        %v252 = vld [vmem:[%s215 + $0x120] sm:$0xff]
        %v253 = vld [vmem:[%s215 + $0x128] sm:$0xff]
        %v254 = vld [vmem:[%s215 + $0x130] sm:$0x3]
        %v255 = vld [vmem:[%s215 + $0x138] sm:$0xff]
        %v256 = vld [vmem:[%s215 + $0x140] sm:$0xff]
        %v257 = vld [vmem:[%s215 + $0x148] sm:$0x3]
        %v258 = vld [vmem:[%s215 + $0x150] sm:$0xff]
        %v259 = vld [vmem:[%s215 + $0x158] sm:$0xff]
        %v260 = vld [vmem:[%s215 + $0x160] sm:$0x3]
        %v261 = vld [vmem:[%s215 + $0x168] sm:$0xff]
        %v262 = vld [vmem:[%s215 + $0x170] sm:$0xff]
        %v263 = vld [vmem:[%s215 + $0x178] sm:$0x3]
        %v264 = vld [vmem:[%s215 + $0x180] sm:$0xff]
        %v265 = vld [vmem:[%s215 + $0x188] sm:$0xff]
        %v266 = vld [vmem:[%s215 + $0x190] sm:$0x3]
        %v267 = vld [vmem:[%s215 + $0x198] sm:$0xff]
        %v268 = vld [vmem:[%s215 + $0x1a0] sm:$0xff]
        %v269 = vld [vmem:[%s215 + $0x1a8] sm:$0x3]
        %v270 = vld [vmem:[%s3] sm:$0x1]
        %v272 = vperm.slane %v270, 0
        %v274 = vld [vmem:[%s2] sm:$0xff]
        %v275 = vld [vmem:[%s2 + $0x8] sm:$0xff]
        %v276 = vld [vmem:[%s2 + $0x10] sm:$0xff]
        %v277 = vld [vmem:[%s2 + $0x18] sm:$0xff]
        %vm278 = vcmask 261120
        %v280 = vsel %vm278, %v216, 0
        %v283 = vsel %vm278, %v217, 0
        %v286 = vsel %vm278, %v219, 0
        %v289 = vsel %vm278, %v220, 0
        %v292 = vsel %vm278, %v222, 0
        %v295 = vsel %vm278, %v223, 0
        %v298 = vsel %vm278, %v225, 0
        %v301 = vsel %vm278, %v226, 0
        %v304 = vsel %vm278, %v228, 0
        %v307 = vsel %vm278, %v229, 0
        %v310 = vsel %vm278, %v231, 0
        %v313 = vsel %vm278, %v232, 0
        %v316 = vsel %vm278, %v234, 0
        %v319 = vsel %vm278, %v235, 0
        %v322 = vsel %vm278, %v237, 0
        %v325 = vsel %vm278, %v238, 0
        %v328 = vsel %vm278, %v240, 0
        %v331 = vsel %vm278, %v241, 0
        %v334 = vsel %vm278, %v243, 0
        %v337 = vsel %vm278, %v244, 0
        %v340 = vsel %vm278, %v246, 0
        %v343 = vsel %vm278, %v247, 0
        %v346 = vsel %vm278, %v249, 0
        %v349 = vsel %vm278, %v250, 0
        %v352 = vsel %vm278, %v252, 0
        %v355 = vsel %vm278, %v253, 0
        %v358 = vsel %vm278, %v255, 0
        %v361 = vsel %vm278, %v256, 0
        %v364 = vsel %vm278, %v258, 0
        %v367 = vsel %vm278, %v259, 0
        %v370 = vsel %vm278, %v261, 0
        %v373 = vsel %vm278, %v262, 0
        %375 = vmatpush.msra.mxu0 0.0
        %376 = vmatpush.msra.mxu0 0.0
        %377 = vmatpush.msra.mxu0 0.0
        %378 = vmatpush.msra.mxu0 0.0
        %379 = vmatpush.msra.mxu0 0.0
        %380 = vmatpush.msra.mxu0 0.0
        %381 = vmatpush.msra.mxu0 0.0
        %382 = vmatpush.msra.mxu0 0.0
        %383 = vmatpush.msra.mxu0 0.0
        %384 = vmatpush.msra.mxu0 0.0
        %385 = vmatpush.msra.mxu0 0.0
        %386 = vmatpush.msra.mxu0 0.0
        %387 = vmatpush.msra.mxu0 %v277
        %388 = vmatpush.msra.mxu0 %v276
        %389 = vmatpush.msra.mxu0 %v275
        %390 = vmatpush.msra.mxu0 %v274
        %391 = vmatmul.f32.gmra.mxu0 %v280
        %v392 = vpop.f32.mrf.mxu0
        %v393 = vadd.f32 0.0, %v392
        %394 = vmatmul.f32.gmra.mxu0 %v283
        %v395 = vpop.f32.mrf.mxu0
        %v396 = vadd.f32 0.0, %v395
        %397 = vmatmul.f32.gmra.mxu0 %v286
        %v398 = vpop.f32.mrf.mxu0
        %v399 = vadd.f32 0.0, %v398
        %400 = vmatmul.f32.gmra.mxu0 %v289
        %v401 = vpop.f32.mrf.mxu0
        %v402 = vadd.f32 0.0, %v401
        %403 = vmatmul.f32.gmra.mxu0 %v292
        %v404 = vpop.f32.mrf.mxu0
        %v405 = vadd.f32 0.0, %v404
        %406 = vmatmul.f32.gmra.mxu0 %v295
        %v407 = vpop.f32.mrf.mxu0
        %v408 = vadd.f32 0.0, %v407
        %409 = vmatmul.f32.gmra.mxu0 %v298
        %v410 = vpop.f32.mrf.mxu0
        %v411 = vadd.f32 0.0, %v410
        %412 = vmatmul.f32.gmra.mxu0 %v301
        %v413 = vpop.f32.mrf.mxu0
        %v414 = vadd.f32 0.0, %v413
        %415 = vmatmul.f32.gmra.mxu0 %v304
        %v416 = vpop.f32.mrf.mxu0
        %v417 = vadd.f32 0.0, %v416
        %418 = vmatmul.f32.gmra.mxu0 %v307
        %v419 = vpop.f32.mrf.mxu0
        %v420 = vadd.f32 0.0, %v419
        %421 = vmatmul.f32.gmra.mxu0 %v310
        %v422 = vpop.f32.mrf.mxu0
        %v423 = vadd.f32 0.0, %v422
        %424 = vmatmul.f32.gmra.mxu0 %v313
        %v425 = vpop.f32.mrf.mxu0
        %v426 = vadd.f32 0.0, %v425
        %427 = vmatmul.f32.gmra.mxu0 %v316
        %v428 = vpop.f32.mrf.mxu0
        %v429 = vadd.f32 0.0, %v428
        %430 = vmatmul.f32.gmra.mxu0 %v319
        %v431 = vpop.f32.mrf.mxu0
        %v432 = vadd.f32 0.0, %v431
        %433 = vmatmul.f32.gmra.mxu0 %v322
        %v434 = vpop.f32.mrf.mxu0
        %v435 = vadd.f32 0.0, %v434
        %436 = vmatmul.f32.gmra.mxu0 %v325
        %v437 = vpop.f32.mrf.mxu0
        %v438 = vadd.f32 0.0, %v437
        %439 = vmatmul.f32.gmra.mxu0 %v328
        %v440 = vpop.f32.mrf.mxu0
        %v441 = vadd.f32 0.0, %v440
        %442 = vmatmul.f32.gmra.mxu0 %v331
        %v443 = vpop.f32.mrf.mxu0
        %v444 = vadd.f32 0.0, %v443
        %445 = vmatmul.f32.gmra.mxu0 %v334
        %v446 = vpop.f32.mrf.mxu0
        %v447 = vadd.f32 0.0, %v446
        %448 = vmatmul.f32.gmra.mxu0 %v337
        %v449 = vpop.f32.mrf.mxu0
        %v450 = vadd.f32 0.0, %v449
        %451 = vmatmul.f32.gmra.mxu0 %v340
        %v452 = vpop.f32.mrf.mxu0
        %v453 = vadd.f32 0.0, %v452
        %454 = vmatmul.f32.gmra.mxu0 %v343
        %v455 = vpop.f32.mrf.mxu0
        %v456 = vadd.f32 0.0, %v455
        %457 = vmatmul.f32.gmra.mxu0 %v346
        %v458 = vpop.f32.mrf.mxu0
        %v459 = vadd.f32 0.0, %v458
        %460 = vmatmul.f32.gmra.mxu0 %v349
        %v461 = vpop.f32.mrf.mxu0
        %v462 = vadd.f32 0.0, %v461
        %463 = vmatmul.f32.gmra.mxu0 %v352
        %v464 = vpop.f32.mrf.mxu0
        %v465 = vadd.f32 0.0, %v464
        %466 = vmatmul.f32.gmra.mxu0 %v355
        %v467 = vpop.f32.mrf.mxu0
        %v468 = vadd.f32 0.0, %v467
        %469 = vmatmul.f32.gmra.mxu0 %v358
        %v470 = vpop.f32.mrf.mxu0
        %v471 = vadd.f32 0.0, %v470
        %472 = vmatmul.f32.gmra.mxu0 %v361
        %v473 = vpop.f32.mrf.mxu0
        %v474 = vadd.f32 0.0, %v473
        %475 = vmatmul.f32.gmra.mxu0 %v364
        %v476 = vpop.f32.mrf.mxu0
        %v477 = vadd.f32 0.0, %v476
        %478 = vmatmul.f32.gmra.mxu0 %v367
        %v479 = vpop.f32.mrf.mxu0
        %v480 = vadd.f32 0.0, %v479
        %481 = vmatmul.f32.gmra.mxu0 %v370
        %v482 = vpop.f32.mrf.mxu0
        %v483 = vadd.f32 0.0, %v482
        %484 = vmatmul.f32.gmra.mxu0 %v373
        %v485 = vpop.f32.mrf.mxu0
        %v486 = vadd.f32 0.0, %v485
        %487 = vdwg.mxu0
        %v488 = vadd.f32 %v272, %v393
        %v489 = vadd.f32 %v272, %v396
        %v490 = vadd.f32 %v272, %v399
        %v491 = vadd.f32 %v272, %v402
        %v492 = vadd.f32 %v272, %v405
        %v493 = vadd.f32 %v272, %v408
        %v494 = vadd.f32 %v272, %v411
        %v495 = vadd.f32 %v272, %v414
        %v496 = vadd.f32 %v272, %v417
        %v497 = vadd.f32 %v272, %v420
        %v498 = vadd.f32 %v272, %v423
        %v499 = vadd.f32 %v272, %v426
        %v500 = vadd.f32 %v272, %v429
        %v501 = vadd.f32 %v272, %v432
        %v502 = vadd.f32 %v272, %v435
        %v503 = vadd.f32 %v272, %v438
        %v504 = vadd.f32 %v272, %v441
        %v505 = vadd.f32 %v272, %v444
        %v506 = vadd.f32 %v272, %v447
        %v507 = vadd.f32 %v272, %v450
        %v508 = vadd.f32 %v272, %v453
        %v509 = vadd.f32 %v272, %v456
        %v510 = vadd.f32 %v272, %v459
        %v511 = vadd.f32 %v272, %v462
        %v512 = vadd.f32 %v272, %v465
        %v513 = vadd.f32 %v272, %v468
        %v514 = vadd.f32 %v272, %v471
        %v515 = vadd.f32 %v272, %v474
        %v516 = vadd.f32 %v272, %v477
        %v517 = vadd.f32 %v272, %v480
        %v518 = vadd.f32 %v272, %v483
        %v519 = vadd.f32 %v272, %v486
        %vm536 = vcmask 1046528
        %v537 = vrot.slane %v216, 1
        %v538 = vrot.slane %v217, 1
        %v539 = vsel %vm536, %v537, %v538
        %v540 = vrot.slane %v218, 1
        %v541 = vsel %vm536, %v538, %v540
        %v542 = vrot.slane %v219, 1
        %v543 = vrot.slane %v220, 1
        %v544 = vsel %vm536, %v542, %v543
        %v545 = vrot.slane %v221, 1
        %v546 = vsel %vm536, %v543, %v545
        %v547 = vrot.slane %v222, 1
        %v548 = vrot.slane %v223, 1
        %v549 = vsel %vm536, %v547, %v548
        %v550 = vrot.slane %v224, 1
        %v551 = vsel %vm536, %v548, %v550
        %v552 = vrot.slane %v225, 1
        %v553 = vrot.slane %v226, 1
        %v554 = vsel %vm536, %v552, %v553
        %v555 = vrot.slane %v227, 1
        %v556 = vsel %vm536, %v553, %v555
        %v557 = vrot.slane %v228, 1
        %v558 = vrot.slane %v229, 1
        %v559 = vsel %vm536, %v557, %v558
        %v560 = vrot.slane %v230, 1
        %v561 = vsel %vm536, %v558, %v560
        %v562 = vrot.slane %v231, 1
        %v563 = vrot.slane %v232, 1
        %v564 = vsel %vm536, %v562, %v563
        %v565 = vrot.slane %v233, 1
        %v566 = vsel %vm536, %v563, %v565
        %v567 = vrot.slane %v234, 1
        %v568 = vrot.slane %v235, 1
        %v569 = vsel %vm536, %v567, %v568
        %v570 = vrot.slane %v236, 1
        %v571 = vsel %vm536, %v568, %v570
        %v572 = vrot.slane %v237, 1
        %v573 = vrot.slane %v238, 1
        %v574 = vsel %vm536, %v572, %v573
        %v575 = vrot.slane %v239, 1
        %v576 = vsel %vm536, %v573, %v575
        %v577 = vrot.slane %v240, 1
        %v578 = vrot.slane %v241, 1
        %v579 = vsel %vm536, %v577, %v578
        %v580 = vrot.slane %v242, 1
        %v581 = vsel %vm536, %v578, %v580
        %v582 = vrot.slane %v243, 1
        %v583 = vrot.slane %v244, 1
        %v584 = vsel %vm536, %v582, %v583
        %v585 = vrot.slane %v245, 1
        %v586 = vsel %vm536, %v583, %v585
        %v587 = vrot.slane %v246, 1
        %v588 = vrot.slane %v247, 1
        %v589 = vsel %vm536, %v587, %v588
        %v590 = vrot.slane %v248, 1
        %v591 = vsel %vm536, %v588, %v590
        %v592 = vrot.slane %v249, 1
        %v593 = vrot.slane %v250, 1
        %v594 = vsel %vm536, %v592, %v593
        %v595 = vrot.slane %v251, 1
        %v596 = vsel %vm536, %v593, %v595
        %v597 = vrot.slane %v252, 1
        %v598 = vrot.slane %v253, 1
        %v599 = vsel %vm536, %v597, %v598
        %v600 = vrot.slane %v254, 1
        %v601 = vsel %vm536, %v598, %v600
        %v602 = vrot.slane %v255, 1
        %v603 = vrot.slane %v256, 1
        %v604 = vsel %vm536, %v602, %v603
        %v605 = vrot.slane %v257, 1
        %v606 = vsel %vm536, %v603, %v605
        %v607 = vrot.slane %v258, 1
        %v608 = vrot.slane %v259, 1
        %v609 = vsel %vm536, %v607, %v608
        %v610 = vrot.slane %v260, 1
        %v611 = vsel %vm536, %v608, %v610
        %v612 = vrot.slane %v261, 1
        %v613 = vrot.slane %v262, 1
        %v614 = vsel %vm536, %v612, %v613
        %v615 = vrot.slane %v263, 1
        %v616 = vsel %vm536, %v613, %v615
        %s617 = scalar_lea.vmem %s2, 32
        %v618 = vld [vmem:[%s617] sm:$0xff]
        %v619 = vld [vmem:[%s617 + $0x8] sm:$0xff]
        %v620 = vld [vmem:[%s617 + $0x10] sm:$0xff]
        %v621 = vld [vmem:[%s617 + $0x18] sm:$0xff]
        %v622 = vsel %vm278, %v539, 0
        %v624 = vsel %vm278, %v541, 0
        %v626 = vsel %vm278, %v544, 0
        %v628 = vsel %vm278, %v546, 0
        %v630 = vsel %vm278, %v549, 0
        %v632 = vsel %vm278, %v551, 0
        %v634 = vsel %vm278, %v554, 0
        %v636 = vsel %vm278, %v556, 0
        %v638 = vsel %vm278, %v559, 0
        %v640 = vsel %vm278, %v561, 0
        %v642 = vsel %vm278, %v564, 0
        %v644 = vsel %vm278, %v566, 0
        %v646 = vsel %vm278, %v569, 0
        %v648 = vsel %vm278, %v571, 0
        %v650 = vsel %vm278, %v574, 0
        %v652 = vsel %vm278, %v576, 0
        %v654 = vsel %vm278, %v579, 0
        %v656 = vsel %vm278, %v581, 0
        %v658 = vsel %vm278, %v584, 0
        %v660 = vsel %vm278, %v586, 0
        %v662 = vsel %vm278, %v589, 0
        %v664 = vsel %vm278, %v591, 0
        %v666 = vsel %vm278, %v594, 0
        %v668 = vsel %vm278, %v596, 0
        %v670 = vsel %vm278, %v599, 0
        %v672 = vsel %vm278, %v601, 0
        %v674 = vsel %vm278, %v604, 0
        %v676 = vsel %vm278, %v606, 0
        %v678 = vsel %vm278, %v609, 0
        %v680 = vsel %vm278, %v611, 0
        %v682 = vsel %vm278, %v614, 0
        %v684 = vsel %vm278, %v616, 0
        %686 = vmatpush.msra.mxu0 0.0
        %687 = vmatpush.msra.mxu0 0.0
        %688 = vmatpush.msra.mxu0 0.0
        %689 = vmatpush.msra.mxu0 0.0
        %690 = vmatpush.msra.mxu0 0.0
        %691 = vmatpush.msra.mxu0 0.0
        %692 = vmatpush.msra.mxu0 0.0
        %693 = vmatpush.msra.mxu0 0.0
        %694 = vmatpush.msra.mxu0 0.0
        %695 = vmatpush.msra.mxu0 0.0
        %696 = vmatpush.msra.mxu0 0.0
        %697 = vmatpush.msra.mxu0 0.0
        %698 = vmatpush.msra.mxu0 %v621
        %699 = vmatpush.msra.mxu0 %v620
        %700 = vmatpush.msra.mxu0 %v619
        %701 = vmatpush.msra.mxu0 %v618
        %702 = vmatmul.f32.gmra.mxu0 %v622
        %v703 = vpop.f32.mrf.mxu0
        %v704 = vadd.f32 0.0, %v703
        %705 = vmatmul.f32.gmra.mxu0 %v624
        %v706 = vpop.f32.mrf.mxu0
        %v707 = vadd.f32 0.0, %v706
        %708 = vmatmul.f32.gmra.mxu0 %v626
        %v709 = vpop.f32.mrf.mxu0
        %v710 = vadd.f32 0.0, %v709
        %711 = vmatmul.f32.gmra.mxu0 %v628
        %v712 = vpop.f32.mrf.mxu0
        %v713 = vadd.f32 0.0, %v712
        %714 = vmatmul.f32.gmra.mxu0 %v630
        %v715 = vpop.f32.mrf.mxu0
        %v716 = vadd.f32 0.0, %v715
        %717 = vmatmul.f32.gmra.mxu0 %v632
        %v718 = vpop.f32.mrf.mxu0
        %v719 = vadd.f32 0.0, %v718
        %720 = vmatmul.f32.gmra.mxu0 %v634
        %v721 = vpop.f32.mrf.mxu0
        %v722 = vadd.f32 0.0, %v721
        %723 = vmatmul.f32.gmra.mxu0 %v636
        %v724 = vpop.f32.mrf.mxu0
        %v725 = vadd.f32 0.0, %v724
        %726 = vmatmul.f32.gmra.mxu0 %v638
        %v727 = vpop.f32.mrf.mxu0
        %v728 = vadd.f32 0.0, %v727
        %729 = vmatmul.f32.gmra.mxu0 %v640
        %v730 = vpop.f32.mrf.mxu0
        %v731 = vadd.f32 0.0, %v730
        %732 = vmatmul.f32.gmra.mxu0 %v642
        %v733 = vpop.f32.mrf.mxu0
        %v734 = vadd.f32 0.0, %v733
        %735 = vmatmul.f32.gmra.mxu0 %v644
        %v736 = vpop.f32.mrf.mxu0
        %v737 = vadd.f32 0.0, %v736
        %738 = vmatmul.f32.gmra.mxu0 %v646
        %v739 = vpop.f32.mrf.mxu0
        %v740 = vadd.f32 0.0, %v739
        %741 = vmatmul.f32.gmra.mxu0 %v648
        %v742 = vpop.f32.mrf.mxu0
        %v743 = vadd.f32 0.0, %v742
        %744 = vmatmul.f32.gmra.mxu0 %v650
        %v745 = vpop.f32.mrf.mxu0
        %v746 = vadd.f32 0.0, %v745
        %747 = vmatmul.f32.gmra.mxu0 %v652
        %v748 = vpop.f32.mrf.mxu0
        %v749 = vadd.f32 0.0, %v748
        %750 = vmatmul.f32.gmra.mxu0 %v654
        %v751 = vpop.f32.mrf.mxu0
        %v752 = vadd.f32 0.0, %v751
        %753 = vmatmul.f32.gmra.mxu0 %v656
        %v754 = vpop.f32.mrf.mxu0
        %v755 = vadd.f32 0.0, %v754
        %756 = vmatmul.f32.gmra.mxu0 %v658
        %v757 = vpop.f32.mrf.mxu0
        %v758 = vadd.f32 0.0, %v757
        %759 = vmatmul.f32.gmra.mxu0 %v660
        %v760 = vpop.f32.mrf.mxu0
        %v761 = vadd.f32 0.0, %v760
        %762 = vmatmul.f32.gmra.mxu0 %v662
        %v763 = vpop.f32.mrf.mxu0
        %v764 = vadd.f32 0.0, %v763
        %765 = vmatmul.f32.gmra.mxu0 %v664
        %v766 = vpop.f32.mrf.mxu0
        %v767 = vadd.f32 0.0, %v766
        %768 = vmatmul.f32.gmra.mxu0 %v666
        %v769 = vpop.f32.mrf.mxu0
        %v770 = vadd.f32 0.0, %v769
        %771 = vmatmul.f32.gmra.mxu0 %v668
        %v772 = vpop.f32.mrf.mxu0
        %v773 = vadd.f32 0.0, %v772
        %774 = vmatmul.f32.gmra.mxu0 %v670
        %v775 = vpop.f32.mrf.mxu0
        %v776 = vadd.f32 0.0, %v775
        %777 = vmatmul.f32.gmra.mxu0 %v672
        %v778 = vpop.f32.mrf.mxu0
        %v779 = vadd.f32 0.0, %v778
        %780 = vmatmul.f32.gmra.mxu0 %v674
        %v781 = vpop.f32.mrf.mxu0
        %v782 = vadd.f32 0.0, %v781
        %783 = vmatmul.f32.gmra.mxu0 %v676
        %v784 = vpop.f32.mrf.mxu0
        %v785 = vadd.f32 0.0, %v784
        %786 = vmatmul.f32.gmra.mxu0 %v678
        %v787 = vpop.f32.mrf.mxu0
        %v788 = vadd.f32 0.0, %v787
        %789 = vmatmul.f32.gmra.mxu0 %v680
        %v790 = vpop.f32.mrf.mxu0
        %v791 = vadd.f32 0.0, %v790
        %792 = vmatmul.f32.gmra.mxu0 %v682
        %v793 = vpop.f32.mrf.mxu0
        %v794 = vadd.f32 0.0, %v793
        %795 = vmatmul.f32.gmra.mxu0 %v684
        %v796 = vpop.f32.mrf.mxu0
        %v797 = vadd.f32 0.0, %v796
        %798 = vdwg.mxu0
        %v799 = vadd.f32 %v488, %v704
        %v800 = vadd.f32 %v489, %v707
        %v801 = vadd.f32 %v490, %v710
        %v802 = vadd.f32 %v491, %v713
        %v803 = vadd.f32 %v492, %v716
        %v804 = vadd.f32 %v493, %v719
        %v805 = vadd.f32 %v494, %v722
        %v806 = vadd.f32 %v495, %v725
        %v807 = vadd.f32 %v496, %v728
        %v808 = vadd.f32 %v497, %v731
        %v809 = vadd.f32 %v498, %v734
        %v810 = vadd.f32 %v499, %v737
        %v811 = vadd.f32 %v500, %v740
        %v812 = vadd.f32 %v501, %v743
        %v813 = vadd.f32 %v502, %v746
        %v814 = vadd.f32 %v503, %v749
        %v815 = vadd.f32 %v504, %v752
        %v816 = vadd.f32 %v505, %v755
        %v817 = vadd.f32 %v506, %v758
        %v818 = vadd.f32 %v507, %v761
        %v819 = vadd.f32 %v508, %v764
        %v820 = vadd.f32 %v509, %v767
        %v821 = vadd.f32 %v510, %v770
        %v822 = vadd.f32 %v511, %v773
        %v823 = vadd.f32 %v512, %v776
        %v824 = vadd.f32 %v513, %v779
        %v825 = vadd.f32 %v514, %v782
        %v826 = vadd.f32 %v515, %v785
        %v827 = vadd.f32 %v516, %v788
        %v828 = vadd.f32 %v517, %v791
        %v829 = vadd.f32 %v518, %v794
        %v830 = vadd.f32 %v519, %v797
        %vm831 = vcmask 1045504
        %v832 = vrot.slane %v216, 2
        %v833 = vrot.slane %v217, 2
        %v834 = vsel %vm831, %v832, %v833
        %v835 = vrot.slane %v218, 2
        %v836 = vsel %vm831, %v833, %v835
        %v837 = vrot.slane %v219, 2
        %v838 = vrot.slane %v220, 2
        %v839 = vsel %vm831, %v837, %v838
        %v840 = vrot.slane %v221, 2
        %v841 = vsel %vm831, %v838, %v840
        %v842 = vrot.slane %v222, 2
        %v843 = vrot.slane %v223, 2
        %v844 = vsel %vm831, %v842, %v843
        %v845 = vrot.slane %v224, 2
        %v846 = vsel %vm831, %v843, %v845
        %v847 = vrot.slane %v225, 2
        %v848 = vrot.slane %v226, 2
        %v849 = vsel %vm831, %v847, %v848
        %v850 = vrot.slane %v227, 2
        %v851 = vsel %vm831, %v848, %v850
        %v852 = vrot.slane %v228, 2
        %v853 = vrot.slane %v229, 2
        %v854 = vsel %vm831, %v852, %v853
        %v855 = vrot.slane %v230, 2
        %v856 = vsel %vm831, %v853, %v855
        %v857 = vrot.slane %v231, 2
        %v858 = vrot.slane %v232, 2
        %v859 = vsel %vm831, %v857, %v858
        %v860 = vrot.slane %v233, 2
        %v861 = vsel %vm831, %v858, %v860
        %v862 = vrot.slane %v234, 2
        %v863 = vrot.slane %v235, 2
        %v864 = vsel %vm831, %v862, %v863
        %v865 = vrot.slane %v236, 2
        %v866 = vsel %vm831, %v863, %v865
        %v867 = vrot.slane %v237, 2
        %v868 = vrot.slane %v238, 2
        %v869 = vsel %vm831, %v867, %v868
        %v870 = vrot.slane %v239, 2
        %v871 = vsel %vm831, %v868, %v870
        %v872 = vrot.slane %v240, 2
        %v873 = vrot.slane %v241, 2
        %v874 = vsel %vm831, %v872, %v873
        %v875 = vrot.slane %v242, 2
        %v876 = vsel %vm831, %v873, %v875
        %v877 = vrot.slane %v243, 2
        %v878 = vrot.slane %v244, 2
        %v879 = vsel %vm831, %v877, %v878
        %v880 = vrot.slane %v245, 2
        %v881 = vsel %vm831, %v878, %v880
        %v882 = vrot.slane %v246, 2
        %v883 = vrot.slane %v247, 2
        %v884 = vsel %vm831, %v882, %v883
        %v885 = vrot.slane %v248, 2
        %v886 = vsel %vm831, %v883, %v885
        %v887 = vrot.slane %v249, 2
        %v888 = vrot.slane %v250, 2
        %v889 = vsel %vm831, %v887, %v888
        %v890 = vrot.slane %v251, 2
        %v891 = vsel %vm831, %v888, %v890
        %v892 = vrot.slane %v252, 2
        %v893 = vrot.slane %v253, 2
        %v894 = vsel %vm831, %v892, %v893
        %v895 = vrot.slane %v254, 2
        %v896 = vsel %vm831, %v893, %v895
        %v897 = vrot.slane %v255, 2
        %v898 = vrot.slane %v256, 2
        %v899 = vsel %vm831, %v897, %v898
        %v900 = vrot.slane %v257, 2
        %v901 = vsel %vm831, %v898, %v900
        %v902 = vrot.slane %v258, 2
        %v903 = vrot.slane %v259, 2
        %v904 = vsel %vm831, %v902, %v903
        %v905 = vrot.slane %v260, 2
        %v906 = vsel %vm831, %v903, %v905
        %v907 = vrot.slane %v261, 2
        %v908 = vrot.slane %v262, 2
        %v909 = vsel %vm831, %v907, %v908
        %v910 = vrot.slane %v263, 2
        %v911 = vsel %vm831, %v908, %v910
        %s912 = scalar_lea.vmem %s2, 64
        %v913 = vld [vmem:[%s912] sm:$0xff]
        %v914 = vld [vmem:[%s912 + $0x8] sm:$0xff]
        %v915 = vld [vmem:[%s912 + $0x10] sm:$0xff]
        %v916 = vld [vmem:[%s912 + $0x18] sm:$0xff]
        %v917 = vsel %vm278, %v834, 0
        %v919 = vsel %vm278, %v836, 0
        %v921 = vsel %vm278, %v839, 0
        %v923 = vsel %vm278, %v841, 0
        %v925 = vsel %vm278, %v844, 0
        %v927 = vsel %vm278, %v846, 0
        %v929 = vsel %vm278, %v849, 0
        %v931 = vsel %vm278, %v851, 0
        %v933 = vsel %vm278, %v854, 0
        %v935 = vsel %vm278, %v856, 0
        %v937 = vsel %vm278, %v859, 0
        %v939 = vsel %vm278, %v861, 0
        %v941 = vsel %vm278, %v864, 0
        %v943 = vsel %vm278, %v866, 0
        %v945 = vsel %vm278, %v869, 0
        %v947 = vsel %vm278, %v871, 0
        %v949 = vsel %vm278, %v874, 0
        %v951 = vsel %vm278, %v876, 0
        %v953 = vsel %vm278, %v879, 0
        %v955 = vsel %vm278, %v881, 0
        %v957 = vsel %vm278, %v884, 0
        %v959 = vsel %vm278, %v886, 0
        %v961 = vsel %vm278, %v889, 0
        %v963 = vsel %vm278, %v891, 0
        %v965 = vsel %vm278, %v894, 0
        %v967 = vsel %vm278, %v896, 0
        %v969 = vsel %vm278, %v899, 0
        %v971 = vsel %vm278, %v901, 0
        %v973 = vsel %vm278, %v904, 0
        %v975 = vsel %vm278, %v906, 0
        %v977 = vsel %vm278, %v909, 0
        %v979 = vsel %vm278, %v911, 0
        %981 = vmatpush.msra.mxu0 0.0
        %982 = vmatpush.msra.mxu0 0.0
        %983 = vmatpush.msra.mxu0 0.0
        %984 = vmatpush.msra.mxu0 0.0
        %985 = vmatpush.msra.mxu0 0.0
        %986 = vmatpush.msra.mxu0 0.0
        %987 = vmatpush.msra.mxu0 0.0
        %988 = vmatpush.msra.mxu0 0.0
        %989 = vmatpush.msra.mxu0 0.0
        %990 = vmatpush.msra.mxu0 0.0
        %991 = vmatpush.msra.mxu0 0.0
        %992 = vmatpush.msra.mxu0 0.0
        %993 = vmatpush.msra.mxu0 %v916
        %994 = vmatpush.msra.mxu0 %v915
        %995 = vmatpush.msra.mxu0 %v914
        %996 = vmatpush.msra.mxu0 %v913
        %997 = vmatmul.f32.gmra.mxu0 %v917
        %v998 = vpop.f32.mrf.mxu0
        %v999 = vadd.f32 0.0, %v998
        %1000 = vmatmul.f32.gmra.mxu0 %v919
        %v1001 = vpop.f32.mrf.mxu0
        %v1002 = vadd.f32 0.0, %v1001
        %1003 = vmatmul.f32.gmra.mxu0 %v921
        %v1004 = vpop.f32.mrf.mxu0
        %v1005 = vadd.f32 0.0, %v1004
        %1006 = vmatmul.f32.gmra.mxu0 %v923
        %v1007 = vpop.f32.mrf.mxu0
        %v1008 = vadd.f32 0.0, %v1007
        %1009 = vmatmul.f32.gmra.mxu0 %v925
        %v1010 = vpop.f32.mrf.mxu0
        %v1011 = vadd.f32 0.0, %v1010
        %1012 = vmatmul.f32.gmra.mxu0 %v927
        %v1013 = vpop.f32.mrf.mxu0
        %v1014 = vadd.f32 0.0, %v1013
        %1015 = vmatmul.f32.gmra.mxu0 %v929
        %v1016 = vpop.f32.mrf.mxu0
        %v1017 = vadd.f32 0.0, %v1016
        %1018 = vmatmul.f32.gmra.mxu0 %v931
        %v1019 = vpop.f32.mrf.mxu0
        %v1020 = vadd.f32 0.0, %v1019
        %1021 = vmatmul.f32.gmra.mxu0 %v933
        %v1022 = vpop.f32.mrf.mxu0
        %v1023 = vadd.f32 0.0, %v1022
        %1024 = vmatmul.f32.gmra.mxu0 %v935
        %v1025 = vpop.f32.mrf.mxu0
        %v1026 = vadd.f32 0.0, %v1025
        %1027 = vmatmul.f32.gmra.mxu0 %v937
        %v1028 = vpop.f32.mrf.mxu0
        %v1029 = vadd.f32 0.0, %v1028
        %1030 = vmatmul.f32.gmra.mxu0 %v939
        %v1031 = vpop.f32.mrf.mxu0
        %v1032 = vadd.f32 0.0, %v1031
        %1033 = vmatmul.f32.gmra.mxu0 %v941
        %v1034 = vpop.f32.mrf.mxu0
        %v1035 = vadd.f32 0.0, %v1034
        %1036 = vmatmul.f32.gmra.mxu0 %v943
        %v1037 = vpop.f32.mrf.mxu0
        %v1038 = vadd.f32 0.0, %v1037
        %1039 = vmatmul.f32.gmra.mxu0 %v945
        %v1040 = vpop.f32.mrf.mxu0
        %v1041 = vadd.f32 0.0, %v1040
        %1042 = vmatmul.f32.gmra.mxu0 %v947
        %v1043 = vpop.f32.mrf.mxu0
        %v1044 = vadd.f32 0.0, %v1043
        %1045 = vmatmul.f32.gmra.mxu0 %v949
        %v1046 = vpop.f32.mrf.mxu0
        %v1047 = vadd.f32 0.0, %v1046
        %1048 = vmatmul.f32.gmra.mxu0 %v951
        %v1049 = vpop.f32.mrf.mxu0
        %v1050 = vadd.f32 0.0, %v1049
        %1051 = vmatmul.f32.gmra.mxu0 %v953
        %v1052 = vpop.f32.mrf.mxu0
        %v1053 = vadd.f32 0.0, %v1052
        %1054 = vmatmul.f32.gmra.mxu0 %v955
        %v1055 = vpop.f32.mrf.mxu0
        %v1056 = vadd.f32 0.0, %v1055
        %1057 = vmatmul.f32.gmra.mxu0 %v957
        %v1058 = vpop.f32.mrf.mxu0
        %v1059 = vadd.f32 0.0, %v1058
        %1060 = vmatmul.f32.gmra.mxu0 %v959
        %v1061 = vpop.f32.mrf.mxu0
        %v1062 = vadd.f32 0.0, %v1061
        %1063 = vmatmul.f32.gmra.mxu0 %v961
        %v1064 = vpop.f32.mrf.mxu0
        %v1065 = vadd.f32 0.0, %v1064
        %1066 = vmatmul.f32.gmra.mxu0 %v963
        %v1067 = vpop.f32.mrf.mxu0
        %v1068 = vadd.f32 0.0, %v1067
        %1069 = vmatmul.f32.gmra.mxu0 %v965
        %v1070 = vpop.f32.mrf.mxu0
        %v1071 = vadd.f32 0.0, %v1070
        %1072 = vmatmul.f32.gmra.mxu0 %v967
        %v1073 = vpop.f32.mrf.mxu0
        %v1074 = vadd.f32 0.0, %v1073
        %1075 = vmatmul.f32.gmra.mxu0 %v969
        %v1076 = vpop.f32.mrf.mxu0
        %v1077 = vadd.f32 0.0, %v1076
        %1078 = vmatmul.f32.gmra.mxu0 %v971
        %v1079 = vpop.f32.mrf.mxu0
        %v1080 = vadd.f32 0.0, %v1079
        %1081 = vmatmul.f32.gmra.mxu0 %v973
        %v1082 = vpop.f32.mrf.mxu0
        %v1083 = vadd.f32 0.0, %v1082
        %1084 = vmatmul.f32.gmra.mxu0 %v975
        %v1085 = vpop.f32.mrf.mxu0
        %v1086 = vadd.f32 0.0, %v1085
        %1087 = vmatmul.f32.gmra.mxu0 %v977
        %v1088 = vpop.f32.mrf.mxu0
        %v1089 = vadd.f32 0.0, %v1088
        %1090 = vmatmul.f32.gmra.mxu0 %v979
        %v1091 = vpop.f32.mrf.mxu0
        %v1092 = vadd.f32 0.0, %v1091
        %1093 = vdwg.mxu0
        %v1094 = vadd.f32 %v799, %v999
        %v1095 = vadd.f32 %v800, %v1002
        %v1096 = vadd.f32 %v801, %v1005
        %v1097 = vadd.f32 %v802, %v1008
        %v1098 = vadd.f32 %v803, %v1011
        %v1099 = vadd.f32 %v804, %v1014
        %v1100 = vadd.f32 %v805, %v1017
        %v1101 = vadd.f32 %v806, %v1020
        %v1102 = vadd.f32 %v807, %v1023
        %v1103 = vadd.f32 %v808, %v1026
        %v1104 = vadd.f32 %v809, %v1029
        %v1105 = vadd.f32 %v810, %v1032
        %v1106 = vadd.f32 %v811, %v1035
        %v1107 = vadd.f32 %v812, %v1038
        %v1108 = vadd.f32 %v813, %v1041
        %v1109 = vadd.f32 %v814, %v1044
        %v1110 = vadd.f32 %v815, %v1047
        %v1111 = vadd.f32 %v816, %v1050
        %v1112 = vadd.f32 %v817, %v1053
        %v1113 = vadd.f32 %v818, %v1056
        %v1114 = vadd.f32 %v819, %v1059
        %v1115 = vadd.f32 %v820, %v1062
        %v1116 = vadd.f32 %v821, %v1065
        %v1117 = vadd.f32 %v822, %v1068
        %v1118 = vadd.f32 %v823, %v1071
        %v1119 = vadd.f32 %v824, %v1074
        %v1120 = vadd.f32 %v825, %v1077
        %v1121 = vadd.f32 %v826, %v1080
        %v1122 = vadd.f32 %v827, %v1083
        %v1123 = vadd.f32 %v828, %v1086
        %v1124 = vadd.f32 %v829, %v1089
        %v1125 = vadd.f32 %v830, %v1092
        %s1126 = scalar_lea.vmem %s2, 96
        %v1127 = vld [vmem:[%s1126] sm:$0xff]
        %v1128 = vld [vmem:[%s1126 + $0x8] sm:$0xff]
        %v1129 = vld [vmem:[%s1126 + $0x10] sm:$0xff]
        %v1130 = vld [vmem:[%s1126 + $0x18] sm:$0xff]
        %v1132 = vsel %vm278, %v264, 0
        %v1135 = vsel %vm278, %v265, 0
        %1137 = vmatpush.msra.mxu0 0.0
        %1138 = vmatpush.msra.mxu0 0.0
        %1139 = vmatpush.msra.mxu0 0.0
        %1140 = vmatpush.msra.mxu0 0.0
        %1141 = vmatpush.msra.mxu0 0.0
        %1142 = vmatpush.msra.mxu0 0.0
        %1143 = vmatpush.msra.mxu0 0.0
        %1144 = vmatpush.msra.mxu0 0.0
        %1145 = vmatpush.msra.mxu0 0.0
        %1146 = vmatpush.msra.mxu0 0.0
        %1147 = vmatpush.msra.mxu0 0.0
        %1148 = vmatpush.msra.mxu0 0.0
        %1149 = vmatpush.msra.mxu0 %v1130
        %1150 = vmatpush.msra.mxu0 %v1129
        %1151 = vmatpush.msra.mxu0 %v1128
        %1152 = vmatpush.msra.mxu0 %v1127
        %1153 = vmatmul.f32.gmra.mxu0 %v286
        %v1154 = vpop.f32.mrf.mxu0
        %v1155 = vadd.f32 0.0, %v1154
        %1156 = vmatmul.f32.gmra.mxu0 %v289
        %v1157 = vpop.f32.mrf.mxu0
        %v1158 = vadd.f32 0.0, %v1157
        %1159 = vmatmul.f32.gmra.mxu0 %v292
        %v1160 = vpop.f32.mrf.mxu0
        %v1161 = vadd.f32 0.0, %v1160
        %1162 = vmatmul.f32.gmra.mxu0 %v295
        %v1163 = vpop.f32.mrf.mxu0
        %v1164 = vadd.f32 0.0, %v1163
        %1165 = vmatmul.f32.gmra.mxu0 %v298
        %v1166 = vpop.f32.mrf.mxu0
        %v1167 = vadd.f32 0.0, %v1166
        %1168 = vmatmul.f32.gmra.mxu0 %v301
        %v1169 = vpop.f32.mrf.mxu0
        %v1170 = vadd.f32 0.0, %v1169
        %1171 = vmatmul.f32.gmra.mxu0 %v304
        %v1172 = vpop.f32.mrf.mxu0
        %v1173 = vadd.f32 0.0, %v1172
        %1174 = vmatmul.f32.gmra.mxu0 %v307
        %v1175 = vpop.f32.mrf.mxu0
        %v1176 = vadd.f32 0.0, %v1175
        %1177 = vmatmul.f32.gmra.mxu0 %v310
        %v1178 = vpop.f32.mrf.mxu0
        %v1179 = vadd.f32 0.0, %v1178
        %1180 = vmatmul.f32.gmra.mxu0 %v313
        %v1181 = vpop.f32.mrf.mxu0
        %v1182 = vadd.f32 0.0, %v1181
        %1183 = vmatmul.f32.gmra.mxu0 %v316
        %v1184 = vpop.f32.mrf.mxu0
        %v1185 = vadd.f32 0.0, %v1184
        %1186 = vmatmul.f32.gmra.mxu0 %v319
        %v1187 = vpop.f32.mrf.mxu0
        %v1188 = vadd.f32 0.0, %v1187
        %1189 = vmatmul.f32.gmra.mxu0 %v322
        %v1190 = vpop.f32.mrf.mxu0
        %v1191 = vadd.f32 0.0, %v1190
        %1192 = vmatmul.f32.gmra.mxu0 %v325
        %v1193 = vpop.f32.mrf.mxu0
        %v1194 = vadd.f32 0.0, %v1193
        %1195 = vmatmul.f32.gmra.mxu0 %v328
        %v1196 = vpop.f32.mrf.mxu0
        %v1197 = vadd.f32 0.0, %v1196
        %1198 = vmatmul.f32.gmra.mxu0 %v331
        %v1199 = vpop.f32.mrf.mxu0
        %v1200 = vadd.f32 0.0, %v1199
        %1201 = vmatmul.f32.gmra.mxu0 %v334
        %v1202 = vpop.f32.mrf.mxu0
        %v1203 = vadd.f32 0.0, %v1202
        %1204 = vmatmul.f32.gmra.mxu0 %v337
        %v1205 = vpop.f32.mrf.mxu0
        %v1206 = vadd.f32 0.0, %v1205
        %1207 = vmatmul.f32.gmra.mxu0 %v340
        %v1208 = vpop.f32.mrf.mxu0
        %v1209 = vadd.f32 0.0, %v1208
        %1210 = vmatmul.f32.gmra.mxu0 %v343
        %v1211 = vpop.f32.mrf.mxu0
        %v1212 = vadd.f32 0.0, %v1211
        %1213 = vmatmul.f32.gmra.mxu0 %v346
        %v1214 = vpop.f32.mrf.mxu0
        %v1215 = vadd.f32 0.0, %v1214
        %1216 = vmatmul.f32.gmra.mxu0 %v349
        %v1217 = vpop.f32.mrf.mxu0
        %v1218 = vadd.f32 0.0, %v1217
        %1219 = vmatmul.f32.gmra.mxu0 %v352
        %v1220 = vpop.f32.mrf.mxu0
        %v1221 = vadd.f32 0.0, %v1220
        %1222 = vmatmul.f32.gmra.mxu0 %v355
        %v1223 = vpop.f32.mrf.mxu0
        %v1224 = vadd.f32 0.0, %v1223
        %1225 = vmatmul.f32.gmra.mxu0 %v358
        %v1226 = vpop.f32.mrf.mxu0
        %v1227 = vadd.f32 0.0, %v1226
        %1228 = vmatmul.f32.gmra.mxu0 %v361
        %v1229 = vpop.f32.mrf.mxu0
        %v1230 = vadd.f32 0.0, %v1229
        %1231 = vmatmul.f32.gmra.mxu0 %v364
        %v1232 = vpop.f32.mrf.mxu0
        %v1233 = vadd.f32 0.0, %v1232
        %1234 = vmatmul.f32.gmra.mxu0 %v367
        %v1235 = vpop.f32.mrf.mxu0
        %v1236 = vadd.f32 0.0, %v1235
        %1237 = vmatmul.f32.gmra.mxu0 %v370
        %v1238 = vpop.f32.mrf.mxu0
        %v1239 = vadd.f32 0.0, %v1238
        %1240 = vmatmul.f32.gmra.mxu0 %v373
        %v1241 = vpop.f32.mrf.mxu0
        %v1242 = vadd.f32 0.0, %v1241
        %1243 = vmatmul.f32.gmra.mxu0 %v1132
        %v1244 = vpop.f32.mrf.mxu0
        %v1245 = vadd.f32 0.0, %v1244
        %1246 = vmatmul.f32.gmra.mxu0 %v1135
        %v1247 = vpop.f32.mrf.mxu0
        %v1248 = vadd.f32 0.0, %v1247
        %1249 = vdwg.mxu0
        %v1250 = vadd.f32 %v1094, %v1155
        %v1251 = vadd.f32 %v1095, %v1158
        %v1252 = vadd.f32 %v1096, %v1161
        %v1253 = vadd.f32 %v1097, %v1164
        %v1254 = vadd.f32 %v1098, %v1167
        %v1255 = vadd.f32 %v1099, %v1170
        %v1256 = vadd.f32 %v1100, %v1173
        %v1257 = vadd.f32 %v1101, %v1176
        %v1258 = vadd.f32 %v1102, %v1179
        %v1259 = vadd.f32 %v1103, %v1182
        %v1260 = vadd.f32 %v1104, %v1185
        %v1261 = vadd.f32 %v1105, %v1188
        %v1262 = vadd.f32 %v1106, %v1191
        %v1263 = vadd.f32 %v1107, %v1194
        %v1264 = vadd.f32 %v1108, %v1197
        %v1265 = vadd.f32 %v1109, %v1200
        %v1266 = vadd.f32 %v1110, %v1203
        %v1267 = vadd.f32 %v1111, %v1206
        %v1268 = vadd.f32 %v1112, %v1209
        %v1269 = vadd.f32 %v1113, %v1212
        %v1270 = vadd.f32 %v1114, %v1215
        %v1271 = vadd.f32 %v1115, %v1218
        %v1272 = vadd.f32 %v1116, %v1221
        %v1273 = vadd.f32 %v1117, %v1224
        %v1274 = vadd.f32 %v1118, %v1227
        %v1275 = vadd.f32 %v1119, %v1230
        %v1276 = vadd.f32 %v1120, %v1233
        %v1277 = vadd.f32 %v1121, %v1236
        %v1278 = vadd.f32 %v1122, %v1239
        %v1279 = vadd.f32 %v1123, %v1242
        %v1280 = vadd.f32 %v1124, %v1245
        %v1281 = vadd.f32 %v1125, %v1248
        %v1283 = vrot.slane %v264, 1
        %v1284 = vrot.slane %v265, 1
        %v1285 = vsel %vm536, %v1283, %v1284
        %v1286 = vrot.slane %v266, 1
        %v1287 = vsel %vm536, %v1284, %v1286
        %s1288 = scalar_lea.vmem %s2, 128
        %v1289 = vld [vmem:[%s1288] sm:$0xff]
        %v1290 = vld [vmem:[%s1288 + $0x8] sm:$0xff]
        %v1291 = vld [vmem:[%s1288 + $0x10] sm:$0xff]
        %v1292 = vld [vmem:[%s1288 + $0x18] sm:$0xff]
        %v1293 = vsel %vm278, %v1285, 0
        %v1295 = vsel %vm278, %v1287, 0
        %1297 = vmatpush.msra.mxu0 0.0
        %1298 = vmatpush.msra.mxu0 0.0
        %1299 = vmatpush.msra.mxu0 0.0
        %1300 = vmatpush.msra.mxu0 0.0
        %1301 = vmatpush.msra.mxu0 0.0
        %1302 = vmatpush.msra.mxu0 0.0
        %1303 = vmatpush.msra.mxu0 0.0
        %1304 = vmatpush.msra.mxu0 0.0
        %1305 = vmatpush.msra.mxu0 0.0
        %1306 = vmatpush.msra.mxu0 0.0
        %1307 = vmatpush.msra.mxu0 0.0
        %1308 = vmatpush.msra.mxu0 0.0
        %1309 = vmatpush.msra.mxu0 %v1292
        %1310 = vmatpush.msra.mxu0 %v1291
        %1311 = vmatpush.msra.mxu0 %v1290
        %1312 = vmatpush.msra.mxu0 %v1289
        %1313 = vmatmul.f32.gmra.mxu0 %v626
        %v1314 = vpop.f32.mrf.mxu0
        %v1315 = vadd.f32 0.0, %v1314
        %1316 = vmatmul.f32.gmra.mxu0 %v628
        %v1317 = vpop.f32.mrf.mxu0
        %v1318 = vadd.f32 0.0, %v1317
        %1319 = vmatmul.f32.gmra.mxu0 %v630
        %v1320 = vpop.f32.mrf.mxu0
        %v1321 = vadd.f32 0.0, %v1320
        %1322 = vmatmul.f32.gmra.mxu0 %v632
        %v1323 = vpop.f32.mrf.mxu0
        %v1324 = vadd.f32 0.0, %v1323
        %1325 = vmatmul.f32.gmra.mxu0 %v634
        %v1326 = vpop.f32.mrf.mxu0
        %v1327 = vadd.f32 0.0, %v1326
        %1328 = vmatmul.f32.gmra.mxu0 %v636
        %v1329 = vpop.f32.mrf.mxu0
        %v1330 = vadd.f32 0.0, %v1329
        %1331 = vmatmul.f32.gmra.mxu0 %v638
        %v1332 = vpop.f32.mrf.mxu0
        %v1333 = vadd.f32 0.0, %v1332
        %1334 = vmatmul.f32.gmra.mxu0 %v640
        %v1335 = vpop.f32.mrf.mxu0
        %v1336 = vadd.f32 0.0, %v1335
        %1337 = vmatmul.f32.gmra.mxu0 %v642
        %v1338 = vpop.f32.mrf.mxu0
        %v1339 = vadd.f32 0.0, %v1338
        %1340 = vmatmul.f32.gmra.mxu0 %v644
        %v1341 = vpop.f32.mrf.mxu0
        %v1342 = vadd.f32 0.0, %v1341
        %1343 = vmatmul.f32.gmra.mxu0 %v646
        %v1344 = vpop.f32.mrf.mxu0
        %v1345 = vadd.f32 0.0, %v1344
        %1346 = vmatmul.f32.gmra.mxu0 %v648
        %v1347 = vpop.f32.mrf.mxu0
        %v1348 = vadd.f32 0.0, %v1347
        %1349 = vmatmul.f32.gmra.mxu0 %v650
        %v1350 = vpop.f32.mrf.mxu0
        %v1351 = vadd.f32 0.0, %v1350
        %1352 = vmatmul.f32.gmra.mxu0 %v652
        %v1353 = vpop.f32.mrf.mxu0
        %v1354 = vadd.f32 0.0, %v1353
        %1355 = vmatmul.f32.gmra.mxu0 %v654
        %v1356 = vpop.f32.mrf.mxu0
        %v1357 = vadd.f32 0.0, %v1356
        %1358 = vmatmul.f32.gmra.mxu0 %v656
        %v1359 = vpop.f32.mrf.mxu0
        %v1360 = vadd.f32 0.0, %v1359
        %1361 = vmatmul.f32.gmra.mxu0 %v658
        %v1362 = vpop.f32.mrf.mxu0
        %v1363 = vadd.f32 0.0, %v1362
        %1364 = vmatmul.f32.gmra.mxu0 %v660
        %v1365 = vpop.f32.mrf.mxu0
        %v1366 = vadd.f32 0.0, %v1365
        %1367 = vmatmul.f32.gmra.mxu0 %v662
        %v1368 = vpop.f32.mrf.mxu0
        %v1369 = vadd.f32 0.0, %v1368
        %1370 = vmatmul.f32.gmra.mxu0 %v664
        %v1371 = vpop.f32.mrf.mxu0
        %v1372 = vadd.f32 0.0, %v1371
        %1373 = vmatmul.f32.gmra.mxu0 %v666
        %v1374 = vpop.f32.mrf.mxu0
        %v1375 = vadd.f32 0.0, %v1374
        %1376 = vmatmul.f32.gmra.mxu0 %v668
        %v1377 = vpop.f32.mrf.mxu0
        %v1378 = vadd.f32 0.0, %v1377
        %1379 = vmatmul.f32.gmra.mxu0 %v670
        %v1380 = vpop.f32.mrf.mxu0
        %v1381 = vadd.f32 0.0, %v1380
        %1382 = vmatmul.f32.gmra.mxu0 %v672
        %v1383 = vpop.f32.mrf.mxu0
        %v1384 = vadd.f32 0.0, %v1383
        %1385 = vmatmul.f32.gmra.mxu0 %v674
        %v1386 = vpop.f32.mrf.mxu0
        %v1387 = vadd.f32 0.0, %v1386
        %1388 = vmatmul.f32.gmra.mxu0 %v676
        %v1389 = vpop.f32.mrf.mxu0
        %v1390 = vadd.f32 0.0, %v1389
        %1391 = vmatmul.f32.gmra.mxu0 %v678
        %v1392 = vpop.f32.mrf.mxu0
        %v1393 = vadd.f32 0.0, %v1392
        %1394 = vmatmul.f32.gmra.mxu0 %v680
        %v1395 = vpop.f32.mrf.mxu0
        %v1396 = vadd.f32 0.0, %v1395
        %1397 = vmatmul.f32.gmra.mxu0 %v682
        %v1398 = vpop.f32.mrf.mxu0
        %v1399 = vadd.f32 0.0, %v1398
        %1400 = vmatmul.f32.gmra.mxu0 %v684
        %v1401 = vpop.f32.mrf.mxu0
        %v1402 = vadd.f32 0.0, %v1401
        %1403 = vmatmul.f32.gmra.mxu0 %v1293
        %v1404 = vpop.f32.mrf.mxu0
        %v1405 = vadd.f32 0.0, %v1404
        %1406 = vmatmul.f32.gmra.mxu0 %v1295
        %v1407 = vpop.f32.mrf.mxu0
        %v1408 = vadd.f32 0.0, %v1407
        %1409 = vdwg.mxu0
        %v1410 = vadd.f32 %v1250, %v1315
        %v1411 = vadd.f32 %v1251, %v1318
        %v1412 = vadd.f32 %v1252, %v1321
        %v1413 = vadd.f32 %v1253, %v1324
        %v1414 = vadd.f32 %v1254, %v1327
        %v1415 = vadd.f32 %v1255, %v1330
        %v1416 = vadd.f32 %v1256, %v1333
        %v1417 = vadd.f32 %v1257, %v1336
        %v1418 = vadd.f32 %v1258, %v1339
        %v1419 = vadd.f32 %v1259, %v1342
        %v1420 = vadd.f32 %v1260, %v1345
        %v1421 = vadd.f32 %v1261, %v1348
        %v1422 = vadd.f32 %v1262, %v1351
        %v1423 = vadd.f32 %v1263, %v1354
        %v1424 = vadd.f32 %v1264, %v1357
        %v1425 = vadd.f32 %v1265, %v1360
        %v1426 = vadd.f32 %v1266, %v1363
        %v1427 = vadd.f32 %v1267, %v1366
        %v1428 = vadd.f32 %v1268, %v1369
        %v1429 = vadd.f32 %v1269, %v1372
        %v1430 = vadd.f32 %v1270, %v1375
        %v1431 = vadd.f32 %v1271, %v1378
        %v1432 = vadd.f32 %v1272, %v1381
        %v1433 = vadd.f32 %v1273, %v1384
        %v1434 = vadd.f32 %v1274, %v1387
        %v1435 = vadd.f32 %v1275, %v1390
        %v1436 = vadd.f32 %v1276, %v1393
        %v1437 = vadd.f32 %v1277, %v1396
        %v1438 = vadd.f32 %v1278, %v1399
        %v1439 = vadd.f32 %v1279, %v1402
        %v1440 = vadd.f32 %v1280, %v1405
        %v1441 = vadd.f32 %v1281, %v1408
        %v1442 = vrot.slane %v264, 2
        %v1443 = vrot.slane %v265, 2
        %v1444 = vsel %vm831, %v1442, %v1443
        %v1445 = vrot.slane %v266, 2
        %v1446 = vsel %vm831, %v1443, %v1445
        %s1447 = scalar_lea.vmem %s2, 160
        %v1448 = vld [vmem:[%s1447] sm:$0xff]
        %v1449 = vld [vmem:[%s1447 + $0x8] sm:$0xff]
        %v1450 = vld [vmem:[%s1447 + $0x10] sm:$0xff]
        %v1451 = vld [vmem:[%s1447 + $0x18] sm:$0xff]
        %v1452 = vsel %vm278, %v1444, 0
        %v1454 = vsel %vm278, %v1446, 0
        %1456 = vmatpush.msra.mxu0 0.0
        %1457 = vmatpush.msra.mxu0 0.0
        %1458 = vmatpush.msra.mxu0 0.0
        %1459 = vmatpush.msra.mxu0 0.0
        %1460 = vmatpush.msra.mxu0 0.0
        %1461 = vmatpush.msra.mxu0 0.0
        %1462 = vmatpush.msra.mxu0 0.0
        %1463 = vmatpush.msra.mxu0 0.0
        %1464 = vmatpush.msra.mxu0 0.0
        %1465 = vmatpush.msra.mxu0 0.0
        %1466 = vmatpush.msra.mxu0 0.0
        %1467 = vmatpush.msra.mxu0 0.0
        %1468 = vmatpush.msra.mxu0 %v1451
        %1469 = vmatpush.msra.mxu0 %v1450
        %1470 = vmatpush.msra.mxu0 %v1449
        %1471 = vmatpush.msra.mxu0 %v1448
        %1472 = vmatmul.f32.gmra.mxu0 %v921
        %v1473 = vpop.f32.mrf.mxu0
        %v1474 = vadd.f32 0.0, %v1473
        %1475 = vmatmul.f32.gmra.mxu0 %v923
        %v1476 = vpop.f32.mrf.mxu0
        %v1477 = vadd.f32 0.0, %v1476
        %1478 = vmatmul.f32.gmra.mxu0 %v925
        %v1479 = vpop.f32.mrf.mxu0
        %v1480 = vadd.f32 0.0, %v1479
        %1481 = vmatmul.f32.gmra.mxu0 %v927
        %v1482 = vpop.f32.mrf.mxu0
        %v1483 = vadd.f32 0.0, %v1482
        %1484 = vmatmul.f32.gmra.mxu0 %v929
        %v1485 = vpop.f32.mrf.mxu0
        %v1486 = vadd.f32 0.0, %v1485
        %1487 = vmatmul.f32.gmra.mxu0 %v931
        %v1488 = vpop.f32.mrf.mxu0
        %v1489 = vadd.f32 0.0, %v1488
        %1490 = vmatmul.f32.gmra.mxu0 %v933
        %v1491 = vpop.f32.mrf.mxu0
        %v1492 = vadd.f32 0.0, %v1491
        %1493 = vmatmul.f32.gmra.mxu0 %v935
        %v1494 = vpop.f32.mrf.mxu0
        %v1495 = vadd.f32 0.0, %v1494
        %1496 = vmatmul.f32.gmra.mxu0 %v937
        %v1497 = vpop.f32.mrf.mxu0
        %v1498 = vadd.f32 0.0, %v1497
        %1499 = vmatmul.f32.gmra.mxu0 %v939
        %v1500 = vpop.f32.mrf.mxu0
        %v1501 = vadd.f32 0.0, %v1500
        %1502 = vmatmul.f32.gmra.mxu0 %v941
        %v1503 = vpop.f32.mrf.mxu0
        %v1504 = vadd.f32 0.0, %v1503
        %1505 = vmatmul.f32.gmra.mxu0 %v943
        %v1506 = vpop.f32.mrf.mxu0
        %v1507 = vadd.f32 0.0, %v1506
        %1508 = vmatmul.f32.gmra.mxu0 %v945
        %v1509 = vpop.f32.mrf.mxu0
        %v1510 = vadd.f32 0.0, %v1509
        %1511 = vmatmul.f32.gmra.mxu0 %v947
        %v1512 = vpop.f32.mrf.mxu0
        %v1513 = vadd.f32 0.0, %v1512
        %1514 = vmatmul.f32.gmra.mxu0 %v949
        %v1515 = vpop.f32.mrf.mxu0
        %v1516 = vadd.f32 0.0, %v1515
        %1517 = vmatmul.f32.gmra.mxu0 %v951
        %v1518 = vpop.f32.mrf.mxu0
        %v1519 = vadd.f32 0.0, %v1518
        %1520 = vmatmul.f32.gmra.mxu0 %v953
        %v1521 = vpop.f32.mrf.mxu0
        %v1522 = vadd.f32 0.0, %v1521
        %1523 = vmatmul.f32.gmra.mxu0 %v955
        %v1524 = vpop.f32.mrf.mxu0
        %v1525 = vadd.f32 0.0, %v1524
        %1526 = vmatmul.f32.gmra.mxu0 %v957
        %v1527 = vpop.f32.mrf.mxu0
        %v1528 = vadd.f32 0.0, %v1527
        %1529 = vmatmul.f32.gmra.mxu0 %v959
        %v1530 = vpop.f32.mrf.mxu0
        %v1531 = vadd.f32 0.0, %v1530
        %1532 = vmatmul.f32.gmra.mxu0 %v961
        %v1533 = vpop.f32.mrf.mxu0
        %v1534 = vadd.f32 0.0, %v1533
        %1535 = vmatmul.f32.gmra.mxu0 %v963
        %v1536 = vpop.f32.mrf.mxu0
        %v1537 = vadd.f32 0.0, %v1536
        %1538 = vmatmul.f32.gmra.mxu0 %v965
        %v1539 = vpop.f32.mrf.mxu0
        %v1540 = vadd.f32 0.0, %v1539
        %1541 = vmatmul.f32.gmra.mxu0 %v967
        %v1542 = vpop.f32.mrf.mxu0
        %v1543 = vadd.f32 0.0, %v1542
        %1544 = vmatmul.f32.gmra.mxu0 %v969
        %v1545 = vpop.f32.mrf.mxu0
        %v1546 = vadd.f32 0.0, %v1545
        %1547 = vmatmul.f32.gmra.mxu0 %v971
        %v1548 = vpop.f32.mrf.mxu0
        %v1549 = vadd.f32 0.0, %v1548
        %1550 = vmatmul.f32.gmra.mxu0 %v973
        %v1551 = vpop.f32.mrf.mxu0
        %v1552 = vadd.f32 0.0, %v1551
        %1553 = vmatmul.f32.gmra.mxu0 %v975
        %v1554 = vpop.f32.mrf.mxu0
        %v1555 = vadd.f32 0.0, %v1554
        %1556 = vmatmul.f32.gmra.mxu0 %v977
        %v1557 = vpop.f32.mrf.mxu0
        %v1558 = vadd.f32 0.0, %v1557
        %1559 = vmatmul.f32.gmra.mxu0 %v979
        %v1560 = vpop.f32.mrf.mxu0
        %v1561 = vadd.f32 0.0, %v1560
        %1562 = vmatmul.f32.gmra.mxu0 %v1452
        %v1563 = vpop.f32.mrf.mxu0
        %v1564 = vadd.f32 0.0, %v1563
        %1565 = vmatmul.f32.gmra.mxu0 %v1454
        %v1566 = vpop.f32.mrf.mxu0
        %v1567 = vadd.f32 0.0, %v1566
        %1568 = vdwg.mxu0
        %v1569 = vadd.f32 %v1410, %v1474
        %v1570 = vadd.f32 %v1411, %v1477
        %v1571 = vadd.f32 %v1412, %v1480
        %v1572 = vadd.f32 %v1413, %v1483
        %v1573 = vadd.f32 %v1414, %v1486
        %v1574 = vadd.f32 %v1415, %v1489
        %v1575 = vadd.f32 %v1416, %v1492
        %v1576 = vadd.f32 %v1417, %v1495
        %v1577 = vadd.f32 %v1418, %v1498
        %v1578 = vadd.f32 %v1419, %v1501
        %v1579 = vadd.f32 %v1420, %v1504
        %v1580 = vadd.f32 %v1421, %v1507
        %v1581 = vadd.f32 %v1422, %v1510
        %v1582 = vadd.f32 %v1423, %v1513
        %v1583 = vadd.f32 %v1424, %v1516
        %v1584 = vadd.f32 %v1425, %v1519
        %v1585 = vadd.f32 %v1426, %v1522
        %v1586 = vadd.f32 %v1427, %v1525
        %v1587 = vadd.f32 %v1428, %v1528
        %v1588 = vadd.f32 %v1429, %v1531
        %v1589 = vadd.f32 %v1430, %v1534
        %v1590 = vadd.f32 %v1431, %v1537
        %v1591 = vadd.f32 %v1432, %v1540
        %v1592 = vadd.f32 %v1433, %v1543
        %v1593 = vadd.f32 %v1434, %v1546
        %v1594 = vadd.f32 %v1435, %v1549
        %v1595 = vadd.f32 %v1436, %v1552
        %v1596 = vadd.f32 %v1437, %v1555
        %v1597 = vadd.f32 %v1438, %v1558
        %v1598 = vadd.f32 %v1439, %v1561
        %v1599 = vadd.f32 %v1440, %v1564
        %v1600 = vadd.f32 %v1441, %v1567
        %s1601 = scalar_lea.vmem %s2, 192
        %v1602 = vld [vmem:[%s1601] sm:$0xff]
        %v1603 = vld [vmem:[%s1601 + $0x8] sm:$0xff]
        %v1604 = vld [vmem:[%s1601 + $0x10] sm:$0xff]
        %v1605 = vld [vmem:[%s1601 + $0x18] sm:$0xff]
        %v1607 = vsel %vm278, %v267, 0
        %v1610 = vsel %vm278, %v268, 0
        %1612 = vmatpush.msra.mxu0 0.0
        %1613 = vmatpush.msra.mxu0 0.0
        %1614 = vmatpush.msra.mxu0 0.0
        %1615 = vmatpush.msra.mxu0 0.0
        %1616 = vmatpush.msra.mxu0 0.0
        %1617 = vmatpush.msra.mxu0 0.0
        %1618 = vmatpush.msra.mxu0 0.0
        %1619 = vmatpush.msra.mxu0 0.0
        %1620 = vmatpush.msra.mxu0 0.0
        %1621 = vmatpush.msra.mxu0 0.0
        %1622 = vmatpush.msra.mxu0 0.0
        %1623 = vmatpush.msra.mxu0 0.0
        %1624 = vmatpush.msra.mxu0 %v1605
        %1625 = vmatpush.msra.mxu0 %v1604
        %1626 = vmatpush.msra.mxu0 %v1603
        %1627 = vmatpush.msra.mxu0 %v1602
        %1628 = vmatmul.f32.gmra.mxu0 %v292
        %v1629 = vpop.f32.mrf.mxu0
        %v1630 = vadd.f32 0.0, %v1629
        %1631 = vmatmul.f32.gmra.mxu0 %v295
        %v1632 = vpop.f32.mrf.mxu0
        %v1633 = vadd.f32 0.0, %v1632
        %1634 = vmatmul.f32.gmra.mxu0 %v298
        %v1635 = vpop.f32.mrf.mxu0
        %v1636 = vadd.f32 0.0, %v1635
        %1637 = vmatmul.f32.gmra.mxu0 %v301
        %v1638 = vpop.f32.mrf.mxu0
        %v1639 = vadd.f32 0.0, %v1638
        %1640 = vmatmul.f32.gmra.mxu0 %v304
        %v1641 = vpop.f32.mrf.mxu0
        %v1642 = vadd.f32 0.0, %v1641
        %1643 = vmatmul.f32.gmra.mxu0 %v307
        %v1644 = vpop.f32.mrf.mxu0
        %v1645 = vadd.f32 0.0, %v1644
        %1646 = vmatmul.f32.gmra.mxu0 %v310
        %v1647 = vpop.f32.mrf.mxu0
        %v1648 = vadd.f32 0.0, %v1647
        %1649 = vmatmul.f32.gmra.mxu0 %v313
        %v1650 = vpop.f32.mrf.mxu0
        %v1651 = vadd.f32 0.0, %v1650
        %1652 = vmatmul.f32.gmra.mxu0 %v316
        %v1653 = vpop.f32.mrf.mxu0
        %v1654 = vadd.f32 0.0, %v1653
        %1655 = vmatmul.f32.gmra.mxu0 %v319
        %v1656 = vpop.f32.mrf.mxu0
        %v1657 = vadd.f32 0.0, %v1656
        %1658 = vmatmul.f32.gmra.mxu0 %v322
        %v1659 = vpop.f32.mrf.mxu0
        %v1660 = vadd.f32 0.0, %v1659
        %1661 = vmatmul.f32.gmra.mxu0 %v325
        %v1662 = vpop.f32.mrf.mxu0
        %v1663 = vadd.f32 0.0, %v1662
        %1664 = vmatmul.f32.gmra.mxu0 %v328
        %v1665 = vpop.f32.mrf.mxu0
        %v1666 = vadd.f32 0.0, %v1665
        %1667 = vmatmul.f32.gmra.mxu0 %v331
        %v1668 = vpop.f32.mrf.mxu0
        %v1669 = vadd.f32 0.0, %v1668
        %1670 = vmatmul.f32.gmra.mxu0 %v334
        %v1671 = vpop.f32.mrf.mxu0
        %v1672 = vadd.f32 0.0, %v1671
        %1673 = vmatmul.f32.gmra.mxu0 %v337
        %v1674 = vpop.f32.mrf.mxu0
        %v1675 = vadd.f32 0.0, %v1674
        %1676 = vmatmul.f32.gmra.mxu0 %v340
        %v1677 = vpop.f32.mrf.mxu0
        %v1678 = vadd.f32 0.0, %v1677
        %1679 = vmatmul.f32.gmra.mxu0 %v343
        %v1680 = vpop.f32.mrf.mxu0
        %v1681 = vadd.f32 0.0, %v1680
        %1682 = vmatmul.f32.gmra.mxu0 %v346
        %v1683 = vpop.f32.mrf.mxu0
        %v1684 = vadd.f32 0.0, %v1683
        %1685 = vmatmul.f32.gmra.mxu0 %v349
        %v1686 = vpop.f32.mrf.mxu0
        %v1687 = vadd.f32 0.0, %v1686
        %1688 = vmatmul.f32.gmra.mxu0 %v352
        %v1689 = vpop.f32.mrf.mxu0
        %v1690 = vadd.f32 0.0, %v1689
        %1691 = vmatmul.f32.gmra.mxu0 %v355
        %v1692 = vpop.f32.mrf.mxu0
        %v1693 = vadd.f32 0.0, %v1692
        %1694 = vmatmul.f32.gmra.mxu0 %v358
        %v1695 = vpop.f32.mrf.mxu0
        %v1696 = vadd.f32 0.0, %v1695
        %1697 = vmatmul.f32.gmra.mxu0 %v361
        %v1698 = vpop.f32.mrf.mxu0
        %v1699 = vadd.f32 0.0, %v1698
        %1700 = vmatmul.f32.gmra.mxu0 %v364
        %v1701 = vpop.f32.mrf.mxu0
        %v1702 = vadd.f32 0.0, %v1701
        %1703 = vmatmul.f32.gmra.mxu0 %v367
        %v1704 = vpop.f32.mrf.mxu0
        %v1705 = vadd.f32 0.0, %v1704
        %1706 = vmatmul.f32.gmra.mxu0 %v370
        %v1707 = vpop.f32.mrf.mxu0
        %v1708 = vadd.f32 0.0, %v1707
        %1709 = vmatmul.f32.gmra.mxu0 %v373
        %v1710 = vpop.f32.mrf.mxu0
        %v1711 = vadd.f32 0.0, %v1710
        %1712 = vmatmul.f32.gmra.mxu0 %v1132
        %v1713 = vpop.f32.mrf.mxu0
        %v1714 = vadd.f32 0.0, %v1713
        %1715 = vmatmul.f32.gmra.mxu0 %v1135
        %v1716 = vpop.f32.mrf.mxu0
        %v1717 = vadd.f32 0.0, %v1716
        %1718 = vmatmul.f32.gmra.mxu0 %v1607
        %v1719 = vpop.f32.mrf.mxu0
        %v1720 = vadd.f32 0.0, %v1719
        %1721 = vmatmul.f32.gmra.mxu0 %v1610
        %v1722 = vpop.f32.mrf.mxu0
        %v1723 = vadd.f32 0.0, %v1722
        %1724 = vdwg.mxu0
        %v1725 = vadd.f32 %v1569, %v1630
        %v1726 = vadd.f32 %v1570, %v1633
        %v1727 = vadd.f32 %v1571, %v1636
        %v1728 = vadd.f32 %v1572, %v1639
        %v1729 = vadd.f32 %v1573, %v1642
        %v1730 = vadd.f32 %v1574, %v1645
        %v1731 = vadd.f32 %v1575, %v1648
        %v1732 = vadd.f32 %v1576, %v1651
        %v1733 = vadd.f32 %v1577, %v1654
        %v1734 = vadd.f32 %v1578, %v1657
        %v1735 = vadd.f32 %v1579, %v1660
        %v1736 = vadd.f32 %v1580, %v1663
        %v1737 = vadd.f32 %v1581, %v1666
        %v1738 = vadd.f32 %v1582, %v1669
        %v1739 = vadd.f32 %v1583, %v1672
        %v1740 = vadd.f32 %v1584, %v1675
        %v1741 = vadd.f32 %v1585, %v1678
        %v1742 = vadd.f32 %v1586, %v1681
        %v1743 = vadd.f32 %v1587, %v1684
        %v1744 = vadd.f32 %v1588, %v1687
        %v1745 = vadd.f32 %v1589, %v1690
        %v1746 = vadd.f32 %v1590, %v1693
        %v1747 = vadd.f32 %v1591, %v1696
        %v1748 = vadd.f32 %v1592, %v1699
        %v1749 = vadd.f32 %v1593, %v1702
        %v1750 = vadd.f32 %v1594, %v1705
        %v1751 = vadd.f32 %v1595, %v1708
        %v1752 = vadd.f32 %v1596, %v1711
        %v1753 = vadd.f32 %v1597, %v1714
        %v1754 = vadd.f32 %v1598, %v1717
        %v1755 = vadd.f32 %v1599, %v1720
        %v1756 = vadd.f32 %v1600, %v1723
        %v1758 = vrot.slane %v267, 1
        %v1759 = vrot.slane %v268, 1
        %v1760 = vsel %vm536, %v1758, %v1759
        %v1761 = vrot.slane %v269, 1
        %v1762 = vsel %vm536, %v1759, %v1761
        %s1763 = scalar_lea.vmem %s2, 224
        %v1764 = vld [vmem:[%s1763] sm:$0xff]
        %v1765 = vld [vmem:[%s1763 + $0x8] sm:$0xff]
        %v1766 = vld [vmem:[%s1763 + $0x10] sm:$0xff]
        %v1767 = vld [vmem:[%s1763 + $0x18] sm:$0xff]
        %v1768 = vsel %vm278, %v1760, 0
        %v1770 = vsel %vm278, %v1762, 0
        %1772 = vmatpush.msra.mxu0 0.0
        %1773 = vmatpush.msra.mxu0 0.0
        %1774 = vmatpush.msra.mxu0 0.0
        %1775 = vmatpush.msra.mxu0 0.0
        %1776 = vmatpush.msra.mxu0 0.0
        %1777 = vmatpush.msra.mxu0 0.0
        %1778 = vmatpush.msra.mxu0 0.0
        %1779 = vmatpush.msra.mxu0 0.0
        %1780 = vmatpush.msra.mxu0 0.0
        %1781 = vmatpush.msra.mxu0 0.0
        %1782 = vmatpush.msra.mxu0 0.0
        %1783 = vmatpush.msra.mxu0 0.0
        %1784 = vmatpush.msra.mxu0 %v1767
        %1785 = vmatpush.msra.mxu0 %v1766
        %1786 = vmatpush.msra.mxu0 %v1765
        %1787 = vmatpush.msra.mxu0 %v1764
        %1788 = vmatmul.f32.gmra.mxu0 %v630
        %v1789 = vpop.f32.mrf.mxu0
        %v1790 = vadd.f32 0.0, %v1789
        %1791 = vmatmul.f32.gmra.mxu0 %v632
        %v1792 = vpop.f32.mrf.mxu0
        %v1793 = vadd.f32 0.0, %v1792
        %1794 = vmatmul.f32.gmra.mxu0 %v634
        %v1795 = vpop.f32.mrf.mxu0
        %v1796 = vadd.f32 0.0, %v1795
        %1797 = vmatmul.f32.gmra.mxu0 %v636
        %v1798 = vpop.f32.mrf.mxu0
        %v1799 = vadd.f32 0.0, %v1798
        %1800 = vmatmul.f32.gmra.mxu0 %v638
        %v1801 = vpop.f32.mrf.mxu0
        %v1802 = vadd.f32 0.0, %v1801
        %1803 = vmatmul.f32.gmra.mxu0 %v640
        %v1804 = vpop.f32.mrf.mxu0
        %v1805 = vadd.f32 0.0, %v1804
        %1806 = vmatmul.f32.gmra.mxu0 %v642
        %v1807 = vpop.f32.mrf.mxu0
        %v1808 = vadd.f32 0.0, %v1807
        %1809 = vmatmul.f32.gmra.mxu0 %v644
        %v1810 = vpop.f32.mrf.mxu0
        %v1811 = vadd.f32 0.0, %v1810
        %1812 = vmatmul.f32.gmra.mxu0 %v646
        %v1813 = vpop.f32.mrf.mxu0
        %v1814 = vadd.f32 0.0, %v1813
        %1815 = vmatmul.f32.gmra.mxu0 %v648
        %v1816 = vpop.f32.mrf.mxu0
        %v1817 = vadd.f32 0.0, %v1816
        %1818 = vmatmul.f32.gmra.mxu0 %v650
        %v1819 = vpop.f32.mrf.mxu0
        %v1820 = vadd.f32 0.0, %v1819
        %1821 = vmatmul.f32.gmra.mxu0 %v652
        %v1822 = vpop.f32.mrf.mxu0
        %v1823 = vadd.f32 0.0, %v1822
        %1824 = vmatmul.f32.gmra.mxu0 %v654
        %v1825 = vpop.f32.mrf.mxu0
        %v1826 = vadd.f32 0.0, %v1825
        %1827 = vmatmul.f32.gmra.mxu0 %v656
        %v1828 = vpop.f32.mrf.mxu0
        %v1829 = vadd.f32 0.0, %v1828
        %1830 = vmatmul.f32.gmra.mxu0 %v658
        %v1831 = vpop.f32.mrf.mxu0
        %v1832 = vadd.f32 0.0, %v1831
        %1833 = vmatmul.f32.gmra.mxu0 %v660
        %v1834 = vpop.f32.mrf.mxu0
        %v1835 = vadd.f32 0.0, %v1834
        %1836 = vmatmul.f32.gmra.mxu0 %v662
        %v1837 = vpop.f32.mrf.mxu0
        %v1838 = vadd.f32 0.0, %v1837
        %1839 = vmatmul.f32.gmra.mxu0 %v664
        %v1840 = vpop.f32.mrf.mxu0
        %v1841 = vadd.f32 0.0, %v1840
        %1842 = vmatmul.f32.gmra.mxu0 %v666
        %v1843 = vpop.f32.mrf.mxu0
        %v1844 = vadd.f32 0.0, %v1843
        %1845 = vmatmul.f32.gmra.mxu0 %v668
        %v1846 = vpop.f32.mrf.mxu0
        %v1847 = vadd.f32 0.0, %v1846
        %1848 = vmatmul.f32.gmra.mxu0 %v670
        %v1849 = vpop.f32.mrf.mxu0
        %v1850 = vadd.f32 0.0, %v1849
        %1851 = vmatmul.f32.gmra.mxu0 %v672
        %v1852 = vpop.f32.mrf.mxu0
        %v1853 = vadd.f32 0.0, %v1852
        %1854 = vmatmul.f32.gmra.mxu0 %v674
        %v1855 = vpop.f32.mrf.mxu0
        %v1856 = vadd.f32 0.0, %v1855
        %1857 = vmatmul.f32.gmra.mxu0 %v676
        %v1858 = vpop.f32.mrf.mxu0
        %v1859 = vadd.f32 0.0, %v1858
        %1860 = vmatmul.f32.gmra.mxu0 %v678
        %v1861 = vpop.f32.mrf.mxu0
        %v1862 = vadd.f32 0.0, %v1861
        %1863 = vmatmul.f32.gmra.mxu0 %v680
        %v1864 = vpop.f32.mrf.mxu0
        %v1865 = vadd.f32 0.0, %v1864
        %1866 = vmatmul.f32.gmra.mxu0 %v682
        %v1867 = vpop.f32.mrf.mxu0
        %v1868 = vadd.f32 0.0, %v1867
        %1869 = vmatmul.f32.gmra.mxu0 %v684
        %v1870 = vpop.f32.mrf.mxu0
        %v1871 = vadd.f32 0.0, %v1870
        %1872 = vmatmul.f32.gmra.mxu0 %v1293
        %v1873 = vpop.f32.mrf.mxu0
        %v1874 = vadd.f32 0.0, %v1873
        %1875 = vmatmul.f32.gmra.mxu0 %v1295
        %v1876 = vpop.f32.mrf.mxu0
        %v1877 = vadd.f32 0.0, %v1876
        %1878 = vmatmul.f32.gmra.mxu0 %v1768
        %v1879 = vpop.f32.mrf.mxu0
        %v1880 = vadd.f32 0.0, %v1879
        %1881 = vmatmul.f32.gmra.mxu0 %v1770
        %v1882 = vpop.f32.mrf.mxu0
        %v1883 = vadd.f32 0.0, %v1882
        %1884 = vdwg.mxu0
        %v1885 = vadd.f32 %v1725, %v1790
        %v1886 = vadd.f32 %v1726, %v1793
        %v1887 = vadd.f32 %v1727, %v1796
        %v1888 = vadd.f32 %v1728, %v1799
        %v1889 = vadd.f32 %v1729, %v1802
        %v1890 = vadd.f32 %v1730, %v1805
        %v1891 = vadd.f32 %v1731, %v1808
        %v1892 = vadd.f32 %v1732, %v1811
        %v1893 = vadd.f32 %v1733, %v1814
        %v1894 = vadd.f32 %v1734, %v1817
        %v1895 = vadd.f32 %v1735, %v1820
        %v1896 = vadd.f32 %v1736, %v1823
        %v1897 = vadd.f32 %v1737, %v1826
        %v1898 = vadd.f32 %v1738, %v1829
        %v1899 = vadd.f32 %v1739, %v1832
        %v1900 = vadd.f32 %v1740, %v1835
        %v1901 = vadd.f32 %v1741, %v1838
        %v1902 = vadd.f32 %v1742, %v1841
        %v1903 = vadd.f32 %v1743, %v1844
        %v1904 = vadd.f32 %v1744, %v1847
        %v1905 = vadd.f32 %v1745, %v1850
        %v1906 = vadd.f32 %v1746, %v1853
        %v1907 = vadd.f32 %v1747, %v1856
        %v1908 = vadd.f32 %v1748, %v1859
        %v1909 = vadd.f32 %v1749, %v1862
        %v1910 = vadd.f32 %v1750, %v1865
        %v1911 = vadd.f32 %v1751, %v1868
        %v1912 = vadd.f32 %v1752, %v1871
        %v1913 = vadd.f32 %v1753, %v1874
        %v1914 = vadd.f32 %v1754, %v1877
        %v1915 = vadd.f32 %v1755, %v1880
        %v1916 = vadd.f32 %v1756, %v1883
        %v1917 = vrot.slane %v267, 2
        %v1918 = vrot.slane %v268, 2
        %v1919 = vsel %vm831, %v1917, %v1918
        %v1920 = vrot.slane %v269, 2
        %v1921 = vsel %vm831, %v1918, %v1920
        %s1922 = scalar_lea.vmem %s2, 256
        %v1923 = vld [vmem:[%s1922] sm:$0xff]
        %v1924 = vld [vmem:[%s1922 + $0x8] sm:$0xff]
        %v1925 = vld [vmem:[%s1922 + $0x10] sm:$0xff]
        %v1926 = vld [vmem:[%s1922 + $0x18] sm:$0xff]
        %v1927 = vsel %vm278, %v1919, 0
        %v1929 = vsel %vm278, %v1921, 0
        %1931 = vmatpush.msra.mxu0 0.0
        %1932 = vmatpush.msra.mxu0 0.0
        %1933 = vmatpush.msra.mxu0 0.0
        %1934 = vmatpush.msra.mxu0 0.0
        %1935 = vmatpush.msra.mxu0 0.0
        %1936 = vmatpush.msra.mxu0 0.0
        %1937 = vmatpush.msra.mxu0 0.0
        %1938 = vmatpush.msra.mxu0 0.0
        %1939 = vmatpush.msra.mxu0 0.0
        %1940 = vmatpush.msra.mxu0 0.0
        %1941 = vmatpush.msra.mxu0 0.0
        %1942 = vmatpush.msra.mxu0 0.0
        %1943 = vmatpush.msra.mxu0 %v1926
        %1944 = vmatpush.msra.mxu0 %v1925
        %1945 = vmatpush.msra.mxu0 %v1924
        %1946 = vmatpush.msra.mxu0 %v1923
        %1947 = vmatmul.f32.gmra.mxu0 %v925
        %v1948 = vpop.f32.mrf.mxu0
        %v1949 = vadd.f32 0.0, %v1948
        %1950 = vmatmul.f32.gmra.mxu0 %v927
        %v1951 = vpop.f32.mrf.mxu0
        %v1952 = vadd.f32 0.0, %v1951
        %1953 = vmatmul.f32.gmra.mxu0 %v929
        %v1954 = vpop.f32.mrf.mxu0
        %v1955 = vadd.f32 0.0, %v1954
        %1956 = vmatmul.f32.gmra.mxu0 %v931
        %v1957 = vpop.f32.mrf.mxu0
        %v1958 = vadd.f32 0.0, %v1957
        %1959 = vmatmul.f32.gmra.mxu0 %v933
        %v1960 = vpop.f32.mrf.mxu0
        %v1961 = vadd.f32 0.0, %v1960
        %1962 = vmatmul.f32.gmra.mxu0 %v935
        %v1963 = vpop.f32.mrf.mxu0
        %v1964 = vadd.f32 0.0, %v1963
        %1965 = vmatmul.f32.gmra.mxu0 %v937
        %v1966 = vpop.f32.mrf.mxu0
        %v1967 = vadd.f32 0.0, %v1966
        %1968 = vmatmul.f32.gmra.mxu0 %v939
        %v1969 = vpop.f32.mrf.mxu0
        %v1970 = vadd.f32 0.0, %v1969
        %1971 = vmatmul.f32.gmra.mxu0 %v941
        %v1972 = vpop.f32.mrf.mxu0
        %v1973 = vadd.f32 0.0, %v1972
        %1974 = vmatmul.f32.gmra.mxu0 %v943
        %v1975 = vpop.f32.mrf.mxu0
        %v1976 = vadd.f32 0.0, %v1975
        %1977 = vmatmul.f32.gmra.mxu0 %v945
        %v1978 = vpop.f32.mrf.mxu0
        %v1979 = vadd.f32 0.0, %v1978
        %1980 = vmatmul.f32.gmra.mxu0 %v947
        %v1981 = vpop.f32.mrf.mxu0
        %v1982 = vadd.f32 0.0, %v1981
        %1983 = vmatmul.f32.gmra.mxu0 %v949
        %v1984 = vpop.f32.mrf.mxu0
        %v1985 = vadd.f32 0.0, %v1984
        %1986 = vmatmul.f32.gmra.mxu0 %v951
        %v1987 = vpop.f32.mrf.mxu0
        %v1988 = vadd.f32 0.0, %v1987
        %1989 = vmatmul.f32.gmra.mxu0 %v953
        %v1990 = vpop.f32.mrf.mxu0
        %v1991 = vadd.f32 0.0, %v1990
        %1992 = vmatmul.f32.gmra.mxu0 %v955
        %v1993 = vpop.f32.mrf.mxu0
        %v1994 = vadd.f32 0.0, %v1993
        %1995 = vmatmul.f32.gmra.mxu0 %v957
        %v1996 = vpop.f32.mrf.mxu0
        %v1997 = vadd.f32 0.0, %v1996
        %1998 = vmatmul.f32.gmra.mxu0 %v959
        %v1999 = vpop.f32.mrf.mxu0
        %v2000 = vadd.f32 0.0, %v1999
        %2001 = vmatmul.f32.gmra.mxu0 %v961
        %v2002 = vpop.f32.mrf.mxu0
        %v2003 = vadd.f32 0.0, %v2002
        %2004 = vmatmul.f32.gmra.mxu0 %v963
        %v2005 = vpop.f32.mrf.mxu0
        %v2006 = vadd.f32 0.0, %v2005
        %2007 = vmatmul.f32.gmra.mxu0 %v965
        %v2008 = vpop.f32.mrf.mxu0
        %v2009 = vadd.f32 0.0, %v2008
        %2010 = vmatmul.f32.gmra.mxu0 %v967
        %v2011 = vpop.f32.mrf.mxu0
        %v2012 = vadd.f32 0.0, %v2011
        %2013 = vmatmul.f32.gmra.mxu0 %v969
        %v2014 = vpop.f32.mrf.mxu0
        %v2015 = vadd.f32 0.0, %v2014
        %2016 = vmatmul.f32.gmra.mxu0 %v971
        %v2017 = vpop.f32.mrf.mxu0
        %v2018 = vadd.f32 0.0, %v2017
        %2019 = vmatmul.f32.gmra.mxu0 %v973
        %v2020 = vpop.f32.mrf.mxu0
        %v2021 = vadd.f32 0.0, %v2020
        %2022 = vmatmul.f32.gmra.mxu0 %v975
        %v2023 = vpop.f32.mrf.mxu0
        %v2024 = vadd.f32 0.0, %v2023
        %2025 = vmatmul.f32.gmra.mxu0 %v977
        %v2026 = vpop.f32.mrf.mxu0
        %v2027 = vadd.f32 0.0, %v2026
        %2028 = vmatmul.f32.gmra.mxu0 %v979
        %v2029 = vpop.f32.mrf.mxu0
        %v2030 = vadd.f32 0.0, %v2029
        %2031 = vmatmul.f32.gmra.mxu0 %v1452
        %v2032 = vpop.f32.mrf.mxu0
        %v2033 = vadd.f32 0.0, %v2032
        %2034 = vmatmul.f32.gmra.mxu0 %v1454
        %v2035 = vpop.f32.mrf.mxu0
        %v2036 = vadd.f32 0.0, %v2035
        %2037 = vmatmul.f32.gmra.mxu0 %v1927
        %v2038 = vpop.f32.mrf.mxu0
        %v2039 = vadd.f32 0.0, %v2038
        %2040 = vmatmul.f32.gmra.mxu0 %v1929
        %v2041 = vpop.f32.mrf.mxu0
        %v2042 = vadd.f32 0.0, %v2041
        %2043 = vdwg.mxu0
        %v2044 = vadd.f32 %v1885, %v1949
        %v2045 = vadd.f32 %v1886, %v1952
        %v2046 = vadd.f32 %v1887, %v1955
        %v2047 = vadd.f32 %v1888, %v1958
        %v2048 = vadd.f32 %v1889, %v1961
        %v2049 = vadd.f32 %v1890, %v1964
        %v2050 = vadd.f32 %v1891, %v1967
        %v2051 = vadd.f32 %v1892, %v1970
        %v2052 = vadd.f32 %v1893, %v1973
        %v2053 = vadd.f32 %v1894, %v1976
        %v2054 = vadd.f32 %v1895, %v1979
        %v2055 = vadd.f32 %v1896, %v1982
        %v2056 = vadd.f32 %v1897, %v1985
        %v2057 = vadd.f32 %v1898, %v1988
        %v2058 = vadd.f32 %v1899, %v1991
        %v2059 = vadd.f32 %v1900, %v1994
        %v2060 = vadd.f32 %v1901, %v1997
        %v2061 = vadd.f32 %v1902, %v2000
        %v2062 = vadd.f32 %v1903, %v2003
        %v2063 = vadd.f32 %v1904, %v2006
        %v2064 = vadd.f32 %v1905, %v2009
        %v2065 = vadd.f32 %v1906, %v2012
        %v2066 = vadd.f32 %v1907, %v2015
        %v2067 = vadd.f32 %v1908, %v2018
        %v2068 = vadd.f32 %v1909, %v2021
        %v2069 = vadd.f32 %v1910, %v2024
        %v2070 = vadd.f32 %v1911, %v2027
        %v2071 = vadd.f32 %v1912, %v2030
        %v2072 = vadd.f32 %v1913, %v2033
        %v2073 = vadd.f32 %v1914, %v2036
        %v2074 = vadd.f32 %v1915, %v2039
        %v2075 = vadd.f32 %v1916, %v2042
        %v2076 = vld [vmem:[%s210] sm:$0xff]
        %v2077 = vld [vmem:[%s210 + $0x8] sm:$0xff]
        %v2078 = vld [vmem:[%s210 + $0x10] sm:$0xff]
        %v2079 = vld [vmem:[%s210 + $0x18] sm:$0xff]
        %v2080 = vld [vmem:[%s210 + $0x20] sm:$0xff]
        %v2081 = vld [vmem:[%s210 + $0x28] sm:$0xff]
        %v2082 = vld [vmem:[%s210 + $0x30] sm:$0xff]
        %v2083 = vld [vmem:[%s210 + $0x38] sm:$0xff]
        %v2084 = vld [vmem:[%s210 + $0x40] sm:$0xff]
        %v2085 = vld [vmem:[%s210 + $0x48] sm:$0xff]
        %v2086 = vld [vmem:[%s210 + $0x50] sm:$0xff]
        %v2087 = vld [vmem:[%s210 + $0x58] sm:$0xff]
        %v2088 = vld [vmem:[%s210 + $0x60] sm:$0xff]
        %v2089 = vld [vmem:[%s210 + $0x68] sm:$0xff]
        %v2090 = vld [vmem:[%s210 + $0x70] sm:$0xff]
        %v2091 = vld [vmem:[%s210 + $0x78] sm:$0xff]
        %v2092 = vld [vmem:[%s210 + $0x80] sm:$0xff]
        %v2093 = vld [vmem:[%s210 + $0x88] sm:$0xff]
        %v2094 = vld [vmem:[%s210 + $0x90] sm:$0xff]
        %v2095 = vld [vmem:[%s210 + $0x98] sm:$0xff]
        %v2096 = vld [vmem:[%s210 + $0xa0] sm:$0xff]
        %v2097 = vld [vmem:[%s210 + $0xa8] sm:$0xff]
        %v2098 = vld [vmem:[%s210 + $0xb0] sm:$0xff]
        %v2099 = vld [vmem:[%s210 + $0xb8] sm:$0xff]
        %v2100 = vld [vmem:[%s210 + $0xc0] sm:$0xff]
        %v2101 = vld [vmem:[%s210 + $0xc8] sm:$0xff]
        %v2102 = vld [vmem:[%s210 + $0xd0] sm:$0xff]
        %v2103 = vld [vmem:[%s210 + $0xd8] sm:$0xff]
        %v2104 = vld [vmem:[%s210 + $0xe0] sm:$0xff]
        %v2105 = vld [vmem:[%s210 + $0xe8] sm:$0xff]
        %v2106 = vld [vmem:[%s210 + $0xf0] sm:$0xff]
        %v2107 = vld [vmem:[%s210 + $0xf8] sm:$0xff]
        %2140 = vrot.lane.b32.xlu0 %v2044, 32
        %v2141 = vpop.permute.xlu0 %2140
        %2142 = vrot.lane.b32.xlu0 %v2045, 32
        %v2143 = vpop.permute.xlu0 %2142
        %2144 = vrot.lane.b32.xlu0 %v2046, 32
        %v2145 = vpop.permute.xlu0 %2144
        %2146 = vrot.lane.b32.xlu0 %v2047, 32
        %v2147 = vpop.permute.xlu0 %2146
        %2148 = vrot.lane.b32.xlu0 %v2048, 32
        %v2149 = vpop.permute.xlu0 %2148
        %2150 = vrot.lane.b32.xlu0 %v2049, 32
        %v2151 = vpop.permute.xlu0 %2150
        %2152 = vrot.lane.b32.xlu0 %v2050, 32
        %v2153 = vpop.permute.xlu0 %2152
        %2154 = vrot.lane.b32.xlu0 %v2051, 32
        %v2155 = vpop.permute.xlu0 %2154
        %2156 = vrot.lane.b32.xlu0 %v2052, 32
        %v2157 = vpop.permute.xlu0 %2156
        %2158 = vrot.lane.b32.xlu0 %v2053, 32
        %v2159 = vpop.permute.xlu0 %2158
        %2160 = vrot.lane.b32.xlu0 %v2054, 32
        %v2161 = vpop.permute.xlu0 %2160
        %2162 = vrot.lane.b32.xlu0 %v2055, 32
        %v2163 = vpop.permute.xlu0 %2162
        %2164 = vrot.lane.b32.xlu0 %v2056, 32
        %v2165 = vpop.permute.xlu0 %2164
        %2166 = vrot.lane.b32.xlu0 %v2057, 32
        %v2167 = vpop.permute.xlu0 %2166
        %2168 = vrot.lane.b32.xlu0 %v2058, 32
        %v2169 = vpop.permute.xlu0 %2168
        %2170 = vrot.lane.b32.xlu0 %v2059, 32
        %v2171 = vpop.permute.xlu0 %2170
        %2172 = vrot.lane.b32.xlu0 %v2060, 32
        %v2173 = vpop.permute.xlu0 %2172
        %2174 = vrot.lane.b32.xlu0 %v2061, 32
        %v2175 = vpop.permute.xlu0 %2174
        %2176 = vrot.lane.b32.xlu0 %v2062, 32
        %v2177 = vpop.permute.xlu0 %2176
        %2178 = vrot.lane.b32.xlu0 %v2063, 32
        %v2179 = vpop.permute.xlu0 %2178
        %2180 = vrot.lane.b32.xlu0 %v2064, 32
        %v2181 = vpop.permute.xlu0 %2180
        %2182 = vrot.lane.b32.xlu0 %v2065, 32
        %v2183 = vpop.permute.xlu0 %2182
        %2184 = vrot.lane.b32.xlu0 %v2066, 32
        %v2185 = vpop.permute.xlu0 %2184
        %2186 = vrot.lane.b32.xlu0 %v2067, 32
        %v2187 = vpop.permute.xlu0 %2186
        %2188 = vrot.lane.b32.xlu0 %v2068, 32
        %v2189 = vpop.permute.xlu0 %2188
        %2190 = vrot.lane.b32.xlu0 %v2069, 32
        %v2191 = vpop.permute.xlu0 %2190
        %2192 = vrot.lane.b32.xlu0 %v2070, 32
        %v2193 = vpop.permute.xlu0 %2192
        %2194 = vrot.lane.b32.xlu0 %v2071, 32
        %v2195 = vpop.permute.xlu0 %2194
        %2196 = vrot.lane.b32.xlu0 %v2072, 32
        %v2197 = vpop.permute.xlu0 %2196
        %2198 = vrot.lane.b32.xlu0 %v2073, 32
        %v2199 = vpop.permute.xlu0 %2198
        %2200 = vrot.lane.b32.xlu0 %v2074, 32
        %v2201 = vpop.permute.xlu0 %2200
        %2202 = vrot.lane.b32.xlu0 %v2075, 32
        %v2203 = vpop.permute.xlu0 %2202
        %v2236 = vsel %vm278, %v2076, %v2141
        %v2237 = vsel %vm278, %v2077, %v2143
        %v2238 = vsel %vm278, %v2078, %v2145
        %v2239 = vsel %vm278, %v2079, %v2147
        %v2240 = vsel %vm278, %v2080, %v2149
        %v2241 = vsel %vm278, %v2081, %v2151
        %v2242 = vsel %vm278, %v2082, %v2153
        %v2243 = vsel %vm278, %v2083, %v2155
        %v2244 = vsel %vm278, %v2084, %v2157
        %v2245 = vsel %vm278, %v2085, %v2159
        %v2246 = vsel %vm278, %v2086, %v2161
        %v2247 = vsel %vm278, %v2087, %v2163
        %v2248 = vsel %vm278, %v2088, %v2165
        %v2249 = vsel %vm278, %v2089, %v2167
        %v2250 = vsel %vm278, %v2090, %v2169
        %v2251 = vsel %vm278, %v2091, %v2171
        %v2252 = vsel %vm278, %v2092, %v2173
        %v2253 = vsel %vm278, %v2093, %v2175
        %v2254 = vsel %vm278, %v2094, %v2177
        %v2255 = vsel %vm278, %v2095, %v2179
        %v2256 = vsel %vm278, %v2096, %v2181
        %v2257 = vsel %vm278, %v2097, %v2183
        %v2258 = vsel %vm278, %v2098, %v2185
        %v2259 = vsel %vm278, %v2099, %v2187
        %v2260 = vsel %vm278, %v2100, %v2189
        %v2261 = vsel %vm278, %v2101, %v2191
        %v2262 = vsel %vm278, %v2102, %v2193
        %v2263 = vsel %vm278, %v2103, %v2195
        %v2264 = vsel %vm278, %v2104, %v2197
        %v2265 = vsel %vm278, %v2105, %v2199
        %v2266 = vsel %vm278, %v2106, %v2201
        %v2267 = vsel %vm278, %v2107, %v2203
        %v2268 = vmax.f32 %v2236, 0.0
        %v2269 = vmax.f32 %v2237, 0.0
        %v2270 = vmax.f32 %v2238, 0.0
        %v2271 = vmax.f32 %v2239, 0.0
        %v2272 = vmax.f32 %v2240, 0.0
        %v2273 = vmax.f32 %v2241, 0.0
        %v2274 = vmax.f32 %v2242, 0.0
        %v2275 = vmax.f32 %v2243, 0.0
        %v2276 = vmax.f32 %v2244, 0.0
        %v2277 = vmax.f32 %v2245, 0.0
        %v2278 = vmax.f32 %v2246, 0.0
        %v2279 = vmax.f32 %v2247, 0.0
        %v2280 = vmax.f32 %v2248, 0.0
        %v2281 = vmax.f32 %v2249, 0.0
        %v2282 = vmax.f32 %v2250, 0.0
        %v2283 = vmax.f32 %v2251, 0.0
        %v2284 = vmax.f32 %v2252, 0.0
        %v2285 = vmax.f32 %v2253, 0.0
        %v2286 = vmax.f32 %v2254, 0.0
        %v2287 = vmax.f32 %v2255, 0.0
        %v2288 = vmax.f32 %v2256, 0.0
        %v2289 = vmax.f32 %v2257, 0.0
        %v2290 = vmax.f32 %v2258, 0.0
        %v2291 = vmax.f32 %v2259, 0.0
        %v2292 = vmax.f32 %v2260, 0.0
        %v2293 = vmax.f32 %v2261, 0.0
        %v2294 = vmax.f32 %v2262, 0.0
        %v2295 = vmax.f32 %v2263, 0.0
        %v2296 = vmax.f32 %v2264, 0.0
        %v2297 = vmax.f32 %v2265, 0.0
        %v2298 = vmax.f32 %v2266, 0.0
        %v2299 = vmax.f32 %v2267, 0.0
        %2300 = vxpose.xlu0.b32.start [1/16] %v2268, 128
        %2301 = vxpose.xlu0.b32.cont [2/16] %v2269, 128
        %2302 = vxpose.xlu0.b32.cont [3/16] %v2270, 128
        %2303 = vxpose.xlu0.b32.cont [4/16] %v2271, 128
        %2304 = vxpose.xlu0.b32.cont [5/16] %v2272, 128
        %2305 = vxpose.xlu0.b32.cont [6/16] %v2273, 128
        %2306 = vxpose.xlu0.b32.cont [7/16] %v2274, 128
        %2307 = vxpose.xlu0.b32.cont [8/16] %v2275, 128
        %2308 = vxpose.xlu0.b32.cont [9/16] %v2276, 128
        %2309 = vxpose.xlu0.b32.cont [10/16] %v2277, 128
        %2310 = vxpose.xlu0.b32.cont [11/16] %v2278, 128
        %2311 = vxpose.xlu0.b32.cont [12/16] %v2279, 128
        %2312 = vxpose.xlu0.b32.cont [13/16] %v2280, 128
        %2313 = vxpose.xlu0.b32.cont [14/16] %v2281, 128
        %2314 = vxpose.xlu0.b32.cont [15/16] %v2282, 128
        %2315 = vxpose.xlu0.b32.end [16/16] %v2283, 128
        %v2316 = vpop.trf.xlu0
        %v2317 = vpop.trf.xlu0
        %v2318 = vpop.trf.xlu0
        %v2319 = vpop.trf.xlu0
        %v2320 = vpop.trf.xlu0
        %v2321 = vpop.trf.xlu0
        %v2322 = vpop.trf.xlu0
        %v2323 = vpop.trf.xlu0
        %v2324 = vpop.trf.xlu0
        %v2325 = vpop.trf.xlu0
        %v2326 = vpop.trf.xlu0
        %v2327 = vpop.trf.xlu0
        %v2328 = vpop.trf.xlu0
        %v2329 = vpop.trf.xlu0
        %v2330 = vpop.trf.xlu0
        %v2331 = vpop.trf.xlu0
        %2332 = vxpose.xlu0.b32.start [1/16] %v2284, 128
        %2333 = vxpose.xlu0.b32.cont [2/16] %v2285, 128
        %2334 = vxpose.xlu0.b32.cont [3/16] %v2286, 128
        %2335 = vxpose.xlu0.b32.cont [4/16] %v2287, 128
        %2336 = vxpose.xlu0.b32.cont [5/16] %v2288, 128
        %2337 = vxpose.xlu0.b32.cont [6/16] %v2289, 128
        %2338 = vxpose.xlu0.b32.cont [7/16] %v2290, 128
        %2339 = vxpose.xlu0.b32.cont [8/16] %v2291, 128
        %2340 = vxpose.xlu0.b32.cont [9/16] %v2292, 128
        %2341 = vxpose.xlu0.b32.cont [10/16] %v2293, 128
        %2342 = vxpose.xlu0.b32.cont [11/16] %v2294, 128
        %2343 = vxpose.xlu0.b32.cont [12/16] %v2295, 128
        %2344 = vxpose.xlu0.b32.cont [13/16] %v2296, 128
        %2345 = vxpose.xlu0.b32.cont [14/16] %v2297, 128
        %2346 = vxpose.xlu0.b32.cont [15/16] %v2298, 128
        %2347 = vxpose.xlu0.b32.end [16/16] %v2299, 128
        %v2348 = vpop.trf.xlu0
        %v2349 = vpop.trf.xlu0
        %v2350 = vpop.trf.xlu0
        %v2351 = vpop.trf.xlu0
        %v2352 = vpop.trf.xlu0
        %v2353 = vpop.trf.xlu0
        %v2354 = vpop.trf.xlu0
        %v2355 = vpop.trf.xlu0
        %v2356 = vpop.trf.xlu0
        %v2357 = vpop.trf.xlu0
        %v2358 = vpop.trf.xlu0
        %v2359 = vpop.trf.xlu0
        %v2360 = vpop.trf.xlu0
        %v2361 = vpop.trf.xlu0
        %v2362 = vpop.trf.xlu0
        %v2363 = vpop.trf.xlu0
        %v2364 = vadd.f32 %v2316, %v2348
        %2365 = vadd.xlane.f32.xlu0 %v2364
        %v2366 = vpop.xlane.xlu0 %2365
        %v2367 = vadd.f32 %v2317, %v2349
        %2368 = vadd.xlane.f32.xlu0 %v2367
        %v2369 = vpop.xlane.xlu0 %2368
        %v2370 = vadd.f32 %v2318, %v2350
        %2371 = vadd.xlane.f32.xlu0 %v2370
        %v2372 = vpop.xlane.xlu0 %2371
        %v2373 = vadd.f32 %v2319, %v2351
        %2374 = vadd.xlane.f32.xlu0 %v2373
        %v2375 = vpop.xlane.xlu0 %2374
        %v2376 = vadd.f32 %v2320, %v2352
        %2377 = vadd.xlane.f32.xlu0 %v2376
        %v2378 = vpop.xlane.xlu0 %2377
        %v2379 = vadd.f32 %v2321, %v2353
        %2380 = vadd.xlane.f32.xlu0 %v2379
        %v2381 = vpop.xlane.xlu0 %2380
        %v2382 = vadd.f32 %v2322, %v2354
        %2383 = vadd.xlane.f32.xlu0 %v2382
        %v2384 = vpop.xlane.xlu0 %2383
        %v2385 = vadd.f32 %v2323, %v2355
        %2386 = vadd.xlane.f32.xlu0 %v2385
        %v2387 = vpop.xlane.xlu0 %2386
        %v2388 = vmul.f32 %v2366, 0.00390625
        %v2389 = vmul.f32 %v2369, 0.00390625
        %v2390 = vmul.f32 %v2372, 0.00390625
        %v2391 = vmul.f32 %v2375, 0.00390625
        %v2392 = vmul.f32 %v2378, 0.00390625
        %v2393 = vmul.f32 %v2381, 0.00390625
        %v2394 = vmul.f32 %v2384, 0.00390625
        %v2395 = vmul.f32 %v2387, 0.00390625
        %v2396 = vsub.f32 %v2316, %v2388
        %v2397 = vsub.f32 %v2348, %v2388
        %v2398 = vsub.f32 %v2317, %v2389
        %v2399 = vsub.f32 %v2349, %v2389
        %v2400 = vsub.f32 %v2318, %v2390
        %v2401 = vsub.f32 %v2350, %v2390
        %v2402 = vsub.f32 %v2319, %v2391
        %v2403 = vsub.f32 %v2351, %v2391
        %v2404 = vsub.f32 %v2320, %v2392
        %v2405 = vsub.f32 %v2352, %v2392
        %v2406 = vsub.f32 %v2321, %v2393
        %v2407 = vsub.f32 %v2353, %v2393
        %v2408 = vsub.f32 %v2322, %v2394
        %v2409 = vsub.f32 %v2354, %v2394
        %v2410 = vsub.f32 %v2323, %v2395
        %v2411 = vsub.f32 %v2355, %v2395
        %v2412 = vmul.f32 %v2396, %v2396
        %v2413 = vmul.f32 %v2397, %v2397
        %v2414 = vmul.f32 %v2398, %v2398
        %v2415 = vmul.f32 %v2399, %v2399
        %v2416 = vmul.f32 %v2400, %v2400
        %v2417 = vmul.f32 %v2401, %v2401
        %v2418 = vmul.f32 %v2402, %v2402
        %v2419 = vmul.f32 %v2403, %v2403
        %v2420 = vmul.f32 %v2404, %v2404
        %v2421 = vmul.f32 %v2405, %v2405
        %v2422 = vmul.f32 %v2406, %v2406
        %v2423 = vmul.f32 %v2407, %v2407
        %v2424 = vmul.f32 %v2408, %v2408
        %v2425 = vmul.f32 %v2409, %v2409
        %v2426 = vmul.f32 %v2410, %v2410
        %v2427 = vmul.f32 %v2411, %v2411
        %v2428 = vadd.f32 %v2412, %v2413
        %2429 = vadd.xlane.f32.xlu0 %v2428
        %v2430 = vpop.xlane.xlu0 %2429
        %v2431 = vadd.f32 %v2414, %v2415
        %2432 = vadd.xlane.f32.xlu0 %v2431
        %v2433 = vpop.xlane.xlu0 %2432
        %v2434 = vadd.f32 %v2416, %v2417
        %2435 = vadd.xlane.f32.xlu0 %v2434
        %v2436 = vpop.xlane.xlu0 %2435
        %v2437 = vadd.f32 %v2418, %v2419
        %2438 = vadd.xlane.f32.xlu0 %v2437
        %v2439 = vpop.xlane.xlu0 %2438
        %v2440 = vadd.f32 %v2420, %v2421
        %2441 = vadd.xlane.f32.xlu0 %v2440
        %v2442 = vpop.xlane.xlu0 %2441
        %v2443 = vadd.f32 %v2422, %v2423
        %2444 = vadd.xlane.f32.xlu0 %v2443
        %v2445 = vpop.xlane.xlu0 %2444
        %v2446 = vadd.f32 %v2424, %v2425
        %2447 = vadd.xlane.f32.xlu0 %v2446
        %v2448 = vpop.xlane.xlu0 %2447
        %v2449 = vadd.f32 %v2426, %v2427
        %2450 = vadd.xlane.f32.xlu0 %v2449
        %v2451 = vpop.xlane.xlu0 %2450
        %v2452 = vmul.f32 %v2430, 0.00390625
        %v2453 = vmul.f32 %v2433, 0.00390625
        %v2454 = vmul.f32 %v2436, 0.00390625
        %v2455 = vmul.f32 %v2439, 0.00390625
        %v2456 = vmul.f32 %v2442, 0.00390625
        %v2457 = vmul.f32 %v2445, 0.00390625
        %v2458 = vmul.f32 %v2448, 0.00390625
        %v2459 = vmul.f32 %v2451, 0.00390625
        %v2460 = vadd.f32 %v2452, 1e-05
        %v2461 = vadd.f32 %v2453, 1e-05
        %v2462 = vadd.f32 %v2454, 1e-05
        %v2463 = vadd.f32 %v2455, 1e-05
        %v2464 = vadd.f32 %v2456, 1e-05
        %v2465 = vadd.f32 %v2457, 1e-05
        %v2466 = vadd.f32 %v2458, 1e-05
        %v2467 = vadd.f32 %v2459, 1e-05
        %v2468 = vrsqrt.pop %v2460
        %v2469 = vmul.f32 %v2468, %v2460
        %v2470 = vmul.f32 %v2469, %v2468
        %v2471 = vmul.f32 0.5, %v2470
        %v2472 = vsub.f32 1.5, %v2471
        %v2473 = vmul.f32 %v2468, %v2472
        %vm2474 = vweird.f32 %v2460
        %vm2475 = vweird.f32 %v2468
        %vm2476 = vmor %vm2474, %vm2475
        %v2477 = vsel %vm2476, %v2468, %v2473
        %v2478 = vrsqrt.pop %v2461
        %v2479 = vmul.f32 %v2478, %v2461
        %v2480 = vmul.f32 %v2479, %v2478
        %v2481 = vmul.f32 0.5, %v2480
        %v2482 = vsub.f32 1.5, %v2481
        %v2483 = vmul.f32 %v2478, %v2482
        %vm2484 = vweird.f32 %v2461
        %vm2485 = vweird.f32 %v2478
        %vm2486 = vmor %vm2484, %vm2485
        %v2487 = vsel %vm2486, %v2478, %v2483
        %v2488 = vrsqrt.pop %v2462
        %v2489 = vmul.f32 %v2488, %v2462
        %v2490 = vmul.f32 %v2489, %v2488
        %v2491 = vmul.f32 0.5, %v2490
        %v2492 = vsub.f32 1.5, %v2491
        %v2493 = vmul.f32 %v2488, %v2492
        %vm2494 = vweird.f32 %v2462
        %vm2495 = vweird.f32 %v2488
        %vm2496 = vmor %vm2494, %vm2495
        %v2497 = vsel %vm2496, %v2488, %v2493
        %v2498 = vrsqrt.pop %v2463
        %v2499 = vmul.f32 %v2498, %v2463
        %v2500 = vmul.f32 %v2499, %v2498
        %v2501 = vmul.f32 0.5, %v2500
        %v2502 = vsub.f32 1.5, %v2501
        %v2503 = vmul.f32 %v2498, %v2502
        %vm2504 = vweird.f32 %v2463
        %vm2505 = vweird.f32 %v2498
        %vm2506 = vmor %vm2504, %vm2505
        %v2507 = vsel %vm2506, %v2498, %v2503
        %v2508 = vrsqrt.pop %v2464
        %v2509 = vmul.f32 %v2508, %v2464
        %v2510 = vmul.f32 %v2509, %v2508
        %v2511 = vmul.f32 0.5, %v2510
        %v2512 = vsub.f32 1.5, %v2511
        %v2513 = vmul.f32 %v2508, %v2512
        %vm2514 = vweird.f32 %v2464
        %vm2515 = vweird.f32 %v2508
        %vm2516 = vmor %vm2514, %vm2515
        %v2517 = vsel %vm2516, %v2508, %v2513
        %v2518 = vrsqrt.pop %v2465
        %v2519 = vmul.f32 %v2518, %v2465
        %v2520 = vmul.f32 %v2519, %v2518
        %v2521 = vmul.f32 0.5, %v2520
        %v2522 = vsub.f32 1.5, %v2521
        %v2523 = vmul.f32 %v2518, %v2522
        %vm2524 = vweird.f32 %v2465
        %vm2525 = vweird.f32 %v2518
        %vm2526 = vmor %vm2524, %vm2525
        %v2527 = vsel %vm2526, %v2518, %v2523
        %v2528 = vrsqrt.pop %v2466
        %v2529 = vmul.f32 %v2528, %v2466
        %v2530 = vmul.f32 %v2529, %v2528
        %v2531 = vmul.f32 0.5, %v2530
        %v2532 = vsub.f32 1.5, %v2531
        %v2533 = vmul.f32 %v2528, %v2532
        %vm2534 = vweird.f32 %v2466
        %vm2535 = vweird.f32 %v2528
        %vm2536 = vmor %vm2534, %vm2535
        %v2537 = vsel %vm2536, %v2528, %v2533
        %v2538 = vrsqrt.pop %v2467
        %v2539 = vmul.f32 %v2538, %v2467
        %v2540 = vmul.f32 %v2539, %v2538
        %v2541 = vmul.f32 0.5, %v2540
        %v2542 = vsub.f32 1.5, %v2541
        %v2543 = vmul.f32 %v2538, %v2542
        %vm2544 = vweird.f32 %v2467
        %vm2545 = vweird.f32 %v2538
        %vm2546 = vmor %vm2544, %vm2545
        %v2547 = vsel %vm2546, %v2538, %v2543
        %v2548 = vmul.f32 %v2396, %v2477
        %v2549 = vmul.f32 %v2397, %v2477
        %v2550 = vmul.f32 %v2398, %v2487
        %v2551 = vmul.f32 %v2399, %v2487
        %v2552 = vmul.f32 %v2400, %v2497
        %v2553 = vmul.f32 %v2401, %v2497
        %v2554 = vmul.f32 %v2402, %v2507
        %v2555 = vmul.f32 %v2403, %v2507
        %v2556 = vmul.f32 %v2404, %v2517
        %v2557 = vmul.f32 %v2405, %v2517
        %v2558 = vmul.f32 %v2406, %v2527
        %v2559 = vmul.f32 %v2407, %v2527
        %v2560 = vmul.f32 %v2408, %v2537
        %v2561 = vmul.f32 %v2409, %v2537
        %v2562 = vmul.f32 %v2410, %v2547
        %v2563 = vmul.f32 %v2411, %v2547
        %v2564 = vmax.f32 %v2548, 0.0
        %v2565 = vmax.f32 %v2549, 0.0
        %v2566 = vmax.f32 %v2550, 0.0
        %v2567 = vmax.f32 %v2551, 0.0
        %v2568 = vmax.f32 %v2552, 0.0
        %v2569 = vmax.f32 %v2553, 0.0
        %v2570 = vmax.f32 %v2554, 0.0
        %v2571 = vmax.f32 %v2555, 0.0
        %v2572 = vmax.f32 %v2556, 0.0
        %v2573 = vmax.f32 %v2557, 0.0
        %v2574 = vmax.f32 %v2558, 0.0
        %v2575 = vmax.f32 %v2559, 0.0
        %v2576 = vmax.f32 %v2560, 0.0
        %v2577 = vmax.f32 %v2561, 0.0
        %v2578 = vmax.f32 %v2562, 0.0
        %v2579 = vmax.f32 %v2563, 0.0
        %2580 = vst [vmem:[%s205] sm:$0xff] %v2564
        %2581 = vst [vmem:[%s205 + $0x8] sm:$0xff] %v2565
        %2582 = vst [vmem:[%s205 + $0x10] sm:$0xff] %v2566
        %2583 = vst [vmem:[%s205 + $0x18] sm:$0xff] %v2567
        %2584 = vst [vmem:[%s205 + $0x20] sm:$0xff] %v2568
        %2585 = vst [vmem:[%s205 + $0x28] sm:$0xff] %v2569
        %2586 = vst [vmem:[%s205 + $0x30] sm:$0xff] %v2570
        %2587 = vst [vmem:[%s205 + $0x38] sm:$0xff] %v2571
        %2588 = vst [vmem:[%s205 + $0x40] sm:$0xff] %v2572
        %2589 = vst [vmem:[%s205 + $0x48] sm:$0xff] %v2573
        %2590 = vst [vmem:[%s205 + $0x50] sm:$0xff] %v2574
        %2591 = vst [vmem:[%s205 + $0x58] sm:$0xff] %v2575
        %2592 = vst [vmem:[%s205 + $0x60] sm:$0xff] %v2576
        %2593 = vst [vmem:[%s205 + $0x68] sm:$0xff] %v2577
        %2594 = vst [vmem:[%s205 + $0x70] sm:$0xff] %v2578
        %2595 = vst [vmem:[%s205 + $0x78] sm:$0xff] %v2579
        %s2596 = sand.u32 %s120, 1
        %s2597 = scalar_lea.sflag [#allocation3], %s2596
        %s2598 = sand.u32 %s120, 1
        %s2599 = smul.addr %s2598, 128
        %s2600 = scalar_lea.vmem [#allocation2], %s2599
        // Predicated region
        $region37: #{tpu_custom_call.1} parent=35 // pred_check
          %p2601 = pneg %p130
        $region38: #{tpu_custom_call.1} parent=35 // pred_check_branch
          %2603 = sbr.rel (%p2601) target = $region40
        $region39: #{tpu_custom_call.1} parent=35 // pred_region
          %2605 = vsyncadd %s2597, 0
          %s2606 = smul.addr %s18, 16
          %s2607 = smul.addr %s2606, 8
          %s2608 = scalar_lea.hbm %s4, %s2607
          %s2609 = sshll.u32 %s2600, 4
          %s2610 = int_to_ptr.vmem [resolvable:$true] %s2609
          %s2611 = sshll.u32 %s2608, 4
          %s2612 = int_to_ptr.hbm [resolvable:$true] %s2611
          %2617 = dma.vmem_to_hbm [thread:$0]  %s2610, 2048, %s2612, %s2597, 256, 256, 16
        $region40: #{tpu_custom_call.1} parent=35 // pred_fallthru
          _
      $region36: #{tpu_custom_call.1} parent=5 // pred_fallthru
        _
      %p2618 = scmp.le.s32.totalorder 2, %s13
      // Predicated region
      $region41: #{tpu_custom_call.1} parent=5 // pred_check
        %p2619 = pneg %p2618
      $region42: #{tpu_custom_call.1} parent=5 // pred_check_branch
        %2621 = sbr.rel (%p2619) target = $region44
      $region43: #{tpu_custom_call.1} parent=5 // pred_region
        %s2622 = ssub.s32 %s13, 2
        // Predicated region
        $region45: #{tpu_custom_call.1} parent=43 // pred_check
          %p2623 = pneg %p136
        $region46: #{tpu_custom_call.1} parent=43 // pred_check_branch
          %2625 = sbr.rel (%p2623) target = $region48
        $region47: #{tpu_custom_call.1} parent=43 // pred_region
          %s2626 = sand.u32 %s121, 1
          %s2627 = scalar_lea.sflag [#allocation3], %s2626
          %s2628 = sand.u32 %s121, 1
          %s2629 = smul.addr %s2628, 128
          %s2630 = scalar_lea.vmem [#allocation2], %s2629
          %2632 = dma.done %s2627, 2048
        $region48: #{tpu_custom_call.1} parent=43 // pred_fallthru
          _
      $region44: #{tpu_custom_call.1} parent=5 // pred_fallthru
        _
    $region6: #{tpu_custom_call.1} parent=1 // loop_footer
      %s17 = sadd.s32 1, %s13
    $region7: #{tpu_custom_call.1} parent=1 // loop_footer_branch
      %12 = sbr.rel target = $region3
    $region8: #{tpu_custom_call.1} parent=1 // loop_exit
      _
    %2633 = vsyncpa [#allocation3], 1
    %s2634 = scalar_lea.sflag [#allocation3], 1
    %2635 = vsyncpa %s2634, 1

</llo_original>
